<compile_context>
chip_gen: v7x
topology: tpu7x:2x2x1
jax: 0.10.0
libtpu: 0.0.40
codegen_flags: <defaults>
</compile_context>

<pallas_src>
import math
import functools

import jax
import jax.numpy as jnp
from jax import lax
from jax.experimental import pallas as pl
from jax.experimental.pallas import tpu as pltpu


# ---------------------------------------------------------------------------
# Pallas kernel
# ---------------------------------------------------------------------------
def _layer_norm(v, g, b, eps=1e-6):
    mu = jnp.mean(v, axis=-1, keepdims=True)
    var = jnp.mean((v - mu) ** 2, axis=-1, keepdims=True)
    return (v - mu) * lax.rsqrt(var + eps) * g + b


def encoder_layer_kernel(x_ref, mask_ref,
                         ln1_g, ln1_b,
                         wqkv, bqkv, wo, bo,
                         ln2_g, ln2_b,
                         w1, b1, w2, b2,
                         out_ref, *, heads):
    x = x_ref[0]                      # [S, D] f32
    S, D = x.shape
    dh = D // heads

    # Additive attention bias, computed once (hoisted out of the head math).
    # Applied to the f32 score accumulator, never to bf16 operands.
    bias = jnp.where(mask_ref[0] != 0, jnp.float32(-1e18), jnp.float32(0.0))

    # --- pre-attention LayerNorm (f32) --------------------------------------
    xn = _layer_norm(x, ln1_g[...], ln1_b[...])
    xn_bf = xn.astype(jnp.bfloat16)

    # --- fused QKV projection: bf16 operands, f32 accumulation ---------------
    # (1/sqrt(dh) is already folded into the Q columns of wqkv / bqkv.)
    qkv = jnp.dot(xn_bf, wqkv[...],
                  preferred_element_type=jnp.float32) + bqkv[...]   # [S, 3D] f32

    # [S, 3D] -> [3H, S, dh]; groups 0..H-1 = Q heads, H..2H-1 = K, 2H..3H-1 = V
    qkv_h = pltpu.einshape("sgd->gsd",
                           qkv.astype(jnp.bfloat16).reshape(S, 3 * heads, dh))
    q_h = qkv_h[0:heads]              # [H, S, dh] bf16
    k_h = qkv_h[heads:2 * heads]
    v_h = qkv_h[2 * heads:3 * heads]

    # --- batched-over-heads attention on the MXU ----------------------------
    scores = jnp.einsum("hqd,hkd->hqk", q_h, k_h,
                        preferred_element_type=jnp.float32)         # [H, S, S] f32
    scores = scores + bias[None, :, :]                              # mask in f32

    m = jnp.max(scores, axis=-1, keepdims=True)                     # [H, S, 1]
    p = jnp.exp(scores - m)                                         # unnormalized
    l = jnp.sum(p, axis=-1, keepdims=True)                          # [H, S, 1]
    # TODO(synk): attention dropout is identity (eval / deterministic mode).

    ctx = jnp.einsum("hqk,hkd->hqd", p.astype(jnp.bfloat16), v_h,
                     preferred_element_type=jnp.float32)            # [H, S, dh]
    # Deferred softmax normalization on the small [H, S, dh] tensor (EUP).
    ctx = ctx * pl.reciprocal(l, approx=True)

    context = pltpu.einshape("hsd->shd", ctx.astype(jnp.bfloat16)).reshape(S, D)

    attn_out = jnp.dot(context, wo[...],
                       preferred_element_type=jnp.float32) + bo[...]

    # --- residual (dropout == identity) --------------------------------------
    out = attn_out + x

    # --- PositionwiseFeedForward: LN -> W1 -> relu -> W2 -> + residual --------
    on = _layer_norm(out, ln2_g[...], ln2_b[...]).astype(jnp.bfloat16)
    inter = jnp.dot(on, w1[...], preferred_element_type=jnp.float32) + b1[...]
    inter = jnp.maximum(inter, 0.0).astype(jnp.bfloat16)
    ffn = jnp.dot(inter, w2[...], preferred_element_type=jnp.float32) + b2[...]

    out_ref[0] = ffn + out


# ---------------------------------------------------------------------------
# Parameter preparation (one-time transform, do NOT run per forward call)
# ---------------------------------------------------------------------------
def prepare_params(params, heads):
    """Fuse Wq/Wk/Wv into one [D, 3D] projection, fold the 1/sqrt(dh) query
    scale into its Q columns, and cast matmul weights to bf16 (accumulation
    stays f32 on the MXU). LayerNorm params and biases remain f32."""
    (ln1_g, ln1_b, wq, bq, wk, bk, wv, bv, wo, bo,
     ln2_g, ln2_b, w1, b1, w2, b2) = params
    D = wq.shape[0]
    dh = D // heads
    scale = jnp.float32(1.0 / math.sqrt(dh))
    wqkv = jnp.concatenate([wq * scale, wk, wv], axis=1).astype(jnp.bfloat16)
    bqkv = jnp.concatenate([bq * scale, bk, bv], axis=1)   # f32 [1, 3D]
    bf = lambda w: w.astype(jnp.bfloat16)
    return (ln1_g, ln1_b,
            wqkv, bqkv,
            bf(wo), bo,
            ln2_g, ln2_b,
            bf(w1), b1,
            bf(w2), b2)


# ---------------------------------------------------------------------------
# Wrapper
# ---------------------------------------------------------------------------
def stransformer_encoder_layer(x, mask, prepped_params, heads):
    B, S, D = x.shape
    param_list = list(prepped_params)

    in_specs = [
        pl.BlockSpec((1, S, D), lambda b: (b, 0, 0)),   # x
        pl.BlockSpec((1, S, S), lambda b: (b, 0, 0)),   # mask
    ] + [
        # Constant index_map: each weight is DMA'd once and stays resident in
        # VMEM across the whole batch grid (no per-step re-fetch).
        pl.BlockSpec(p.shape, lambda b, n=p.ndim: (0,) * n) for p in param_list
    ]

    kernel = functools.partial(encoder_layer_kernel, heads=heads)

    return pl.pallas_call(
        kernel,
        out_shape=jax.ShapeDtypeStruct((B, S, D), jnp.float32),
        grid=(B,),
        in_specs=in_specs,
        out_specs=pl.BlockSpec((1, S, D), lambda b: (b, 0, 0)),
        compiler_params=pltpu.CompilerParams(
            dimension_semantics=("parallel",),
            # Above v5e's 16 MiB scoped default, safely below v7x's 64 MiB.
            vmem_limit_bytes=48 * 1024 * 1024),
    )(x, mask, *param_list)


# ---------------------------------------------------------------------------
# Pure-JAX f32 reference (mirrors the PyTorch module)
# ---------------------------------------------------------------------------
def reference(x, mask, params, heads):
    (ln1_g, ln1_b, wq, bq, wk, bk, wv, bv, wo, bo,
     ln2_g, ln2_b, w1, b1, w2, b2) = params
    B, S, D = x.shape
    dh = D // heads

    def ln(v, g, b):
        mu = jnp.mean(v, axis=-1, keepdims=True)
        var = jnp.mean((v - mu) ** 2, axis=-1, keepdims=True)
        return (v - mu) / jnp.sqrt(var + 1e-6) * g + b

    xn = ln(x, ln1_g, ln1_b)
    q = xn @ wq + bq
    k = xn @ wk + bk
    v = xn @ wv + bv

    def split(t):  # [B,S,D] -> [B,H,S,dh]
        return t.reshape(B, S, heads, dh).transpose(0, 2, 1, 3)

    qh, kh, vh = split(q) / math.sqrt(dh), split(k), split(v)
    scores = jnp.einsum("bhqd,bhkd->bhqk", qh, kh)
    scores = jnp.where(mask[:, None, :, :] != 0, -1e18, scores)
    attn = jax.nn.softmax(scores, axis=-1)
    ctx = jnp.einsum("bhqk,bhkd->bhqd", attn, vh)
    ctx = ctx.transpose(0, 2, 1, 3).reshape(B, S, D)
    out = ctx @ wo + bo + x

    on = ln(out, ln2_g, ln2_b)
    inter = jnp.maximum(on @ w1 + b1, 0.0)
    return inter @ w2 + b2 + out


# ---------------------------------------------------------------------------
# Main
# ---------------------------------------------------------------------------
if __name__ == "__main__":
    B, S, D, H, F = 2, 8, 32, 4, 64   # batch, seq, d_model, heads, d_ff

    key = jax.random.PRNGKey(0)
    ks = jax.random.split(key, 12)

    x = jax.random.normal(ks[0], (B, S, D), dtype=jnp.float32)

    # padding mask: key positions >= length[b] are masked out
    lengths = jnp.array([S, S - 2], dtype=jnp.int32)
    key_pos = jnp.arange(S, dtype=jnp.int32)
    mask = (key_pos[None, None, :] >= lengths[:, None, None]).astype(jnp.int32)
    mask = jnp.broadcast_to(mask, (B, S, S))

    s_w = 0.1
    params = (
        jnp.ones((1, D), jnp.float32),                                  # ln1 gamma
        jnp.zeros((1, D), jnp.float32),                                 # ln1 beta
        s_w * jax.random.normal(ks[1], (D, D), jnp.float32),            # Wq  [in,out]
        0.01 * jax.random.normal(ks[2], (1, D), jnp.float32),           # bq
        s_w * jax.random.normal(ks[3], (D, D), jnp.float32),            # Wk
        0.01 * jax.random.normal(ks[4], (1, D), jnp.float32),           # bk
        s_w * jax.random.normal(ks[5], (D, D), jnp.float32),            # Wv
        0.01 * jax.random.normal(ks[6], (1, D), jnp.float32),           # bv
        s_w * jax.random.normal(ks[7], (D, D), jnp.float32),            # Wo
        0.01 * jax.random.normal(ks[8], (1, D), jnp.float32),           # bo
        jnp.ones((1, D), jnp.float32),                                  # ln2 gamma (FFN)
        jnp.zeros((1, D), jnp.float32),                                 # ln2 beta
        s_w * jax.random.normal(ks[9], (D, F), jnp.float32),            # W1
        0.01 * jax.random.normal(ks[10], (1, F), jnp.float32),          # b1
        s_w * jax.random.normal(ks[11], (F, D), jnp.float32),           # W2
        jnp.zeros((1, D), jnp.float32),                                 # b2
    )

    # One-time parameter transform (QKV fusion + scale folding + bf16 cast).
    prepped = prepare_params(params, heads=H)

    out = stransformer_encoder_layer(x, mask, prepped, heads=H)
    out = jax.block_until_ready(out)

    ref = jax.block_until_ready(reference(x, mask, params, heads=H))
    assert out.shape == (B, S, D)
    # bf16 matmul operands (f32 accumulation) vs an all-f32 reference.
    assert jnp.allclose(out, ref, atol=2e-2, rtol=2e-2), (
        f"max abs diff {jnp.max(jnp.abs(out - ref))}")

    print("KERNEL_OK")
</pallas_src>

<mosaic_0001>
module attributes {stable_mosaic.version = 11 : i64} {
  func.func @encoder_layer_kernel(%arg0: i32, %arg1: memref<1x8x32xf32, #tpu.memory_space<vmem>>, %arg2: memref<1x8x8xi32, #tpu.memory_space<vmem>>, %arg3: memref<1x32xf32, #tpu.memory_space<vmem>>, %arg4: memref<1x32xf32, #tpu.memory_space<vmem>>, %arg5: memref<32x96xbf16, #tpu.memory_space<vmem>>, %arg6: memref<1x96xf32, #tpu.memory_space<vmem>>, %arg7: memref<32x32xbf16, #tpu.memory_space<vmem>>, %arg8: memref<1x32xf32, #tpu.memory_space<vmem>>, %arg9: memref<1x32xf32, #tpu.memory_space<vmem>>, %arg10: memref<1x32xf32, #tpu.memory_space<vmem>>, %arg11: memref<32x64xbf16, #tpu.memory_space<vmem>>, %arg12: memref<1x64xf32, #tpu.memory_space<vmem>>, %arg13: memref<64x32xbf16, #tpu.memory_space<vmem>>, %arg14: memref<1x32xf32, #tpu.memory_space<vmem>>, %arg15: memref<1x8x32xf32, #tpu.memory_space<vmem>>) attributes {dimension_semantics = [#tpu.dimension_semantics<parallel>], iteration_bounds = array<i64: 2>, scalar_prefetch = 0 : i64, scratch_operands = 0 : i64, tpu.core_type = #tpu.core_type<tc>, window_params = [{transform_indices = @transform_0, window_bounds = array<i64: 1, 8, 32>}, {transform_indices = @transform_1, window_bounds = array<i64: 1, 8, 8>}, {pipeline_mode = #tpu.pipeline_mode<synchronous>, transform_indices = @transform_2, window_bounds = array<i64: 1, 32>}, {pipeline_mode = #tpu.pipeline_mode<synchronous>, transform_indices = @transform_3, window_bounds = array<i64: 1, 32>}, {pipeline_mode = #tpu.pipeline_mode<synchronous>, transform_indices = @transform_4, window_bounds = array<i64: 32, 96>}, {pipeline_mode = #tpu.pipeline_mode<synchronous>, transform_indices = @transform_5, window_bounds = array<i64: 1, 96>}, {pipeline_mode = #tpu.pipeline_mode<synchronous>, transform_indices = @transform_6, window_bounds = array<i64: 32, 32>}, {pipeline_mode = #tpu.pipeline_mode<synchronous>, transform_indices = @transform_7, window_bounds = array<i64: 1, 32>}, {pipeline_mode = #tpu.pipeline_mode<synchronous>, transform_indices = @transform_8, window_bounds = array<i64: 1, 32>}, {pipeline_mode = #tpu.pipeline_mode<synchronous>, transform_indices = @transform_9, window_bounds = array<i64: 1, 32>}, {pipeline_mode = #tpu.pipeline_mode<synchronous>, transform_indices = @transform_10, window_bounds = array<i64: 32, 64>}, {pipeline_mode = #tpu.pipeline_mode<synchronous>, transform_indices = @transform_11, window_bounds = array<i64: 1, 64>}, {pipeline_mode = #tpu.pipeline_mode<synchronous>, transform_indices = @transform_12, window_bounds = array<i64: 64, 32>}, {pipeline_mode = #tpu.pipeline_mode<synchronous>, transform_indices = @transform_13, window_bounds = array<i64: 1, 32>}, {transform_indices = @transform_14, window_bounds = array<i64: 1, 8, 32>}]} {
    %c0 = arith.constant 0 : index
    %c0_0 = arith.constant 0 : index
    %c0_1 = arith.constant 0 : index
    %0 = vector.load %arg1[%c0, %c0_0, %c0_1] : memref<1x8x32xf32, #tpu.memory_space<vmem>>, vector<1x8x32xf32>
    %1 = vector.shape_cast %0 : vector<1x8x32xf32> to vector<8x32xf32>
    %c0_2 = arith.constant 0 : index
    %c0_3 = arith.constant 0 : index
    %c0_4 = arith.constant 0 : index
    %2 = vector.load %arg2[%c0_2, %c0_3, %c0_4] : memref<1x8x8xi32, #tpu.memory_space<vmem>>, vector<1x8x8xi32>
    %3 = vector.shape_cast %2 : vector<1x8x8xi32> to vector<8x8xi32>
    %c0_i32 = arith.constant 0 : i32
    %4 = vector.broadcast %c0_i32 : i32 to vector<8x8xi32>
    %5 = arith.cmpi ne, %3, %4 : vector<8x8xi32>
    %cst = arith.constant -9.99999984E+17 : f32
    %cst_5 = arith.constant 0.000000e+00 : f32
    %6 = vector.broadcast %cst : f32 to vector<8x8xf32>
    %7 = vector.broadcast %cst_5 : f32 to vector<8x8xf32>
    %8 = arith.select %5, %6, %7 : vector<8x8xi1>, vector<8x8xf32>
    %c0_6 = arith.constant 0 : index
    %c0_7 = arith.constant 0 : index
    %9 = vector.load %arg3[%c0_6, %c0_7] : memref<1x32xf32, #tpu.memory_space<vmem>>, vector<1x32xf32>
    %c0_8 = arith.constant 0 : index
    %c0_9 = arith.constant 0 : index
    %10 = vector.load %arg4[%c0_8, %c0_9] : memref<1x32xf32, #tpu.memory_space<vmem>>, vector<1x32xf32>
    %cst_10 = arith.constant dense<0.000000e+00> : vector<8xf32>
    %11 = vector.multi_reduction <add>, %1, %cst_10 [1] : vector<8x32xf32> to vector<8xf32>
    %12 = vector.shape_cast %11 : vector<8xf32> to vector<8x1xf32>
    %cst_11 = arith.constant 3.200000e+01 : f32
    %13 = vector.broadcast %cst_11 : f32 to vector<8x1xf32>
    %14 = arith.divf %12, %13 : vector<8x1xf32>
    %15 = vector.broadcast %14 : vector<8x1xf32> to vector<8x32xf32>
    %16 = arith.subf %1, %15 : vector<8x32xf32>
    %17 = arith.mulf %16, %16 : vector<8x32xf32>
    %cst_12 = arith.constant dense<0.000000e+00> : vector<8xf32>
    %18 = vector.multi_reduction <add>, %17, %cst_12 [1] : vector<8x32xf32> to vector<8xf32>
    %19 = vector.shape_cast %18 : vector<8xf32> to vector<8x1xf32>
    %cst_13 = arith.constant 3.200000e+01 : f32
    %20 = vector.broadcast %cst_13 : f32 to vector<8x1xf32>
    %21 = arith.divf %19, %20 : vector<8x1xf32>
    %22 = vector.broadcast %14 : vector<8x1xf32> to vector<8x32xf32>
    %23 = arith.subf %1, %22 : vector<8x32xf32>
    %cst_14 = arith.constant 9.99999997E-7 : f32
    %24 = vector.broadcast %cst_14 : f32 to vector<8x1xf32>
    %25 = arith.addf %21, %24 : vector<8x1xf32>
    %26 = math.rsqrt %25 : vector<8x1xf32>
    %27 = vector.broadcast %26 : vector<8x1xf32> to vector<8x32xf32>
    %28 = arith.mulf %23, %27 : vector<8x32xf32>
    %29 = vector.broadcast %9 : vector<1x32xf32> to vector<8x32xf32>
    %30 = arith.mulf %28, %29 : vector<8x32xf32>
    %31 = vector.broadcast %10 : vector<1x32xf32> to vector<8x32xf32>
    %32 = arith.addf %30, %31 : vector<8x32xf32>
    %33 = arith.truncf %32 : vector<8x32xf32> to vector<8x32xbf16>
    %c0_15 = arith.constant 0 : index
    %c0_16 = arith.constant 0 : index
    %34 = vector.load %arg5[%c0_15, %c0_16] : memref<32x96xbf16, #tpu.memory_space<vmem>>, vector<32x96xbf16>
    %cst_17 = arith.constant dense<0.000000e+00> : vector<8x96xf32>
    %35 = tpu.matmul %33, %34, %cst_17 {dimension_numbers = #tpu.dot_dimension_numbers<[1], [0], [0], [1], [0, 0, 1, 1], [], []>} : vector<8x32xbf16>, vector<32x96xbf16>, vector<8x96xf32> -> vector<8x96xf32>
    %c0_18 = arith.constant 0 : index
    %c0_19 = arith.constant 0 : index
    %36 = vector.load %arg6[%c0_18, %c0_19] : memref<1x96xf32, #tpu.memory_space<vmem>>, vector<1x96xf32>
    %37 = vector.broadcast %36 : vector<1x96xf32> to vector<8x96xf32>
    %38 = arith.addf %35, %37 : vector<8x96xf32>
    %39 = arith.truncf %38 : vector<8x96xf32> to vector<8x96xbf16>
    %40 = vector.shape_cast %39 : vector<8x96xbf16> to vector<8x12x8xbf16>
    %41 = tpu.transpose %40, [1, 0, 2] : vector<8x12x8xbf16> -> vector<12x8x8xbf16>
    %42 = vector.extract_strided_slice %41 {offsets = [0, 0, 0], sizes = [4, 8, 8], strides = [1, 1, 1]} : vector<12x8x8xbf16> to vector<4x8x8xbf16>
    %43 = vector.extract_strided_slice %41 {offsets = [4, 0, 0], sizes = [4, 8, 8], strides = [1, 1, 1]} : vector<12x8x8xbf16> to vector<4x8x8xbf16>
    %44 = vector.extract_strided_slice %41 {offsets = [8, 0, 0], sizes = [4, 8, 8], strides = [1, 1, 1]} : vector<12x8x8xbf16> to vector<4x8x8xbf16>
    "tpu.trace_start"() <{level = 10 : i32, message = "hqd,hkd->hqk"}> : () -> ()
    %cst_20 = arith.constant dense<0.000000e+00> : vector<4x8x8xf32>
    %45 = tpu.matmul %42, %43, %cst_20 {dimension_numbers = #tpu.dot_dimension_numbers<[2], [2], [1], [1], [0, 0, 0, 1, 1, 1], [0], [0]>} : vector<4x8x8xbf16>, vector<4x8x8xbf16>, vector<4x8x8xf32> -> vector<4x8x8xf32>
    "tpu.trace_stop"() : () -> ()
    %46 = vector.shape_cast %8 : vector<8x8xf32> to vector<1x8x8xf32>
    %47 = vector.broadcast %46 : vector<1x8x8xf32> to vector<4x8x8xf32>
    %48 = arith.addf %45, %47 : vector<4x8x8xf32>
    %cst_21 = arith.constant dense<0xFF800000> : vector<4x8xf32>
    %49 = vector.multi_reduction <maximumf>, %48, %cst_21 [2] : vector<4x8x8xf32> to vector<4x8xf32>
    %50 = vector.shape_cast %49 : vector<4x8xf32> to vector<4x8x1xf32>
    %51 = vector.broadcast %50 : vector<4x8x1xf32> to vector<4x8x8xf32>
    %52 = arith.subf %48, %51 : vector<4x8x8xf32>
    %53 = math.exp %52 : vector<4x8x8xf32>
    %cst_22 = arith.constant dense<0.000000e+00> : vector<4x8xf32>
    %54 = vector.multi_reduction <add>, %53, %cst_22 [2] : vector<4x8x8xf32> to vector<4x8xf32>
    %55 = vector.shape_cast %54 : vector<4x8xf32> to vector<4x8x1xf32>
    %56 = arith.truncf %53 : vector<4x8x8xf32> to vector<4x8x8xbf16>
    "tpu.trace_start"() <{level = 10 : i32, message = "hqk,hkd->hqd"}> : () -> ()
    %cst_23 = arith.constant dense<0.000000e+00> : vector<4x8x8xf32>
    %57 = tpu.matmul %56, %44, %cst_23 {dimension_numbers = #tpu.dot_dimension_numbers<[2], [1], [1], [2], [0, 0, 0, 1, 1, 2], [0], [0]>} : vector<4x8x8xbf16>, vector<4x8x8xbf16>, vector<4x8x8xf32> -> vector<4x8x8xf32>
    "tpu.trace_stop"() : () -> ()
    %58 = tpu.reciprocal %55 {approx = true} : vector<4x8x1xf32> -> vector<4x8x1xf32>
    %59 = vector.broadcast %58 : vector<4x8x1xf32> to vector<4x8x8xf32>
    %60 = arith.mulf %57, %59 : vector<4x8x8xf32>
    %61 = arith.truncf %60 : vector<4x8x8xf32> to vector<4x8x8xbf16>
    %62 = tpu.transpose %61, [1, 0, 2] : vector<4x8x8xbf16> -> vector<8x4x8xbf16>
    %63 = vector.shape_cast %62 : vector<8x4x8xbf16> to vector<8x32xbf16>
    %c0_24 = arith.constant 0 : index
    %c0_25 = arith.constant 0 : index
    %64 = vector.load %arg7[%c0_24, %c0_25] : memref<32x32xbf16, #tpu.memory_space<vmem>>, vector<32x32xbf16>
    %cst_26 = arith.constant dense<0.000000e+00> : vector<8x32xf32>
    %65 = tpu.matmul %63, %64, %cst_26 {dimension_numbers = #tpu.dot_dimension_numbers<[1], [0], [0], [1], [0, 0, 1, 1], [], []>} : vector<8x32xbf16>, vector<32x32xbf16>, vector<8x32xf32> -> vector<8x32xf32>
    %c0_27 = arith.constant 0 : index
    %c0_28 = arith.constant 0 : index
    %66 = vector.load %arg8[%c0_27, %c0_28] : memref<1x32xf32, #tpu.memory_space<vmem>>, vector<1x32xf32>
    %67 = vector.broadcast %66 : vector<1x32xf32> to vector<8x32xf32>
    %68 = arith.addf %65, %67 : vector<8x32xf32>
    %69 = arith.addf %68, %1 : vector<8x32xf32>
    %c0_29 = arith.constant 0 : index
    %c0_30 = arith.constant 0 : index
    %70 = vector.load %arg9[%c0_29, %c0_30] : memref<1x32xf32, #tpu.memory_space<vmem>>, vector<1x32xf32>
    %c0_31 = arith.constant 0 : index
    %c0_32 = arith.constant 0 : index
    %71 = vector.load %arg10[%c0_31, %c0_32] : memref<1x32xf32, #tpu.memory_space<vmem>>, vector<1x32xf32>
    %cst_33 = arith.constant dense<0.000000e+00> : vector<8xf32>
    %72 = vector.multi_reduction <add>, %69, %cst_33 [1] : vector<8x32xf32> to vector<8xf32>
    %73 = vector.shape_cast %72 : vector<8xf32> to vector<8x1xf32>
    %cst_34 = arith.constant 3.200000e+01 : f32
    %74 = vector.broadcast %cst_34 : f32 to vector<8x1xf32>
    %75 = arith.divf %73, %74 : vector<8x1xf32>
    %76 = vector.broadcast %75 : vector<8x1xf32> to vector<8x32xf32>
    %77 = arith.subf %69, %76 : vector<8x32xf32>
    %78 = arith.mulf %77, %77 : vector<8x32xf32>
    %cst_35 = arith.constant dense<0.000000e+00> : vector<8xf32>
    %79 = vector.multi_reduction <add>, %78, %cst_35 [1] : vector<8x32xf32> to vector<8xf32>
    %80 = vector.shape_cast %79 : vector<8xf32> to vector<8x1xf32>
    %cst_36 = arith.constant 3.200000e+01 : f32
    %81 = vector.broadcast %cst_36 : f32 to vector<8x1xf32>
    %82 = arith.divf %80, %81 : vector<8x1xf32>
    %83 = vector.broadcast %75 : vector<8x1xf32> to vector<8x32xf32>
    %84 = arith.subf %69, %83 : vector<8x32xf32>
    %cst_37 = arith.constant 9.99999997E-7 : f32
    %85 = vector.broadcast %cst_37 : f32 to vector<8x1xf32>
    %86 = arith.addf %82, %85 : vector<8x1xf32>
    %87 = math.rsqrt %86 : vector<8x1xf32>
    %88 = vector.broadcast %87 : vector<8x1xf32> to vector<8x32xf32>
    %89 = arith.mulf %84, %88 : vector<8x32xf32>
    %90 = vector.broadcast %70 : vector<1x32xf32> to vector<8x32xf32>
    %91 = arith.mulf %89, %90 : vector<8x32xf32>
    %92 = vector.broadcast %71 : vector<1x32xf32> to vector<8x32xf32>
    %93 = arith.addf %91, %92 : vector<8x32xf32>
    %94 = arith.truncf %93 : vector<8x32xf32> to vector<8x32xbf16>
    %c0_38 = arith.constant 0 : index
    %c0_39 = arith.constant 0 : index
    %95 = vector.load %arg11[%c0_38, %c0_39] : memref<32x64xbf16, #tpu.memory_space<vmem>>, vector<32x64xbf16>
    %cst_40 = arith.constant dense<0.000000e+00> : vector<8x64xf32>
    %96 = tpu.matmul %94, %95, %cst_40 {dimension_numbers = #tpu.dot_dimension_numbers<[1], [0], [0], [1], [0, 0, 1, 1], [], []>} : vector<8x32xbf16>, vector<32x64xbf16>, vector<8x64xf32> -> vector<8x64xf32>
    %c0_41 = arith.constant 0 : index
    %c0_42 = arith.constant 0 : index
    %97 = vector.load %arg12[%c0_41, %c0_42] : memref<1x64xf32, #tpu.memory_space<vmem>>, vector<1x64xf32>
    %98 = vector.broadcast %97 : vector<1x64xf32> to vector<8x64xf32>
    %99 = arith.addf %96, %98 : vector<8x64xf32>
    %cst_43 = arith.constant 0.000000e+00 : f32
    %100 = vector.broadcast %cst_43 : f32 to vector<8x64xf32>
    %101 = arith.maximumf %99, %100 : vector<8x64xf32>
    %102 = arith.truncf %101 : vector<8x64xf32> to vector<8x64xbf16>
    %c0_44 = arith.constant 0 : index
    %c0_45 = arith.constant 0 : index
    %103 = vector.load %arg13[%c0_44, %c0_45] : memref<64x32xbf16, #tpu.memory_space<vmem>>, vector<64x32xbf16>
    %cst_46 = arith.constant dense<0.000000e+00> : vector<8x32xf32>
    %104 = tpu.matmul %102, %103, %cst_46 {dimension_numbers = #tpu.dot_dimension_numbers<[1], [0], [0], [1], [0, 0, 1, 1], [], []>} : vector<8x64xbf16>, vector<64x32xbf16>, vector<8x32xf32> -> vector<8x32xf32>
    %c0_47 = arith.constant 0 : index
    %c0_48 = arith.constant 0 : index
    %105 = vector.load %arg14[%c0_47, %c0_48] : memref<1x32xf32, #tpu.memory_space<vmem>>, vector<1x32xf32>
    %106 = vector.broadcast %105 : vector<1x32xf32> to vector<8x32xf32>
    %107 = arith.addf %104, %106 : vector<8x32xf32>
    %108 = arith.addf %107, %69 : vector<8x32xf32>
    %c0_49 = arith.constant 0 : index
    %c0_50 = arith.constant 0 : index
    %c0_51 = arith.constant 0 : index
    %109 = vector.load %arg15[%c0_49, %c0_50, %c0_51] : memref<1x8x32xf32, #tpu.memory_space<vmem>>, vector<1x8x32xf32>
    %110 = vector.shape_cast %109 : vector<1x8x32xf32> to vector<8x32xf32>
    %111 = vector.shape_cast %108 : vector<8x32xf32> to vector<1x8x32xf32>
    tpu.vector_store %arg15[%c0_49, %c0_50, %c0_51], %111 {strides = array<i32>} : memref<1x8x32xf32, #tpu.memory_space<vmem>>, vector<1x8x32xf32>,
    return
  }
  func.func @transform_0(%arg0: i32) -> (i32, i32, i32) {
    %c0_i32 = arith.constant 0 : i32
    %c0_i32_0 = arith.constant 0 : i32
    %c0_i32_1 = arith.constant 0 : i32
    return %arg0, %c0_i32, %c0_i32_0 : i32, i32, i32
  }
  func.func @transform_1(%arg0: i32) -> (i32, i32, i32) {
    %c0_i32 = arith.constant 0 : i32
    %c0_i32_0 = arith.constant 0 : i32
    %c0_i32_1 = arith.constant 0 : i32
    return %arg0, %c0_i32, %c0_i32_0 : i32, i32, i32
  }
  func.func @transform_2(%arg0: i32) -> (i32, i32) {
    %c0_i32 = arith.constant 0 : i32
    %c0_i32_0 = arith.constant 0 : i32
    %c0_i32_1 = arith.constant 0 : i32
    return %c0_i32, %c0_i32_0 : i32, i32
  }
  func.func @transform_3(%arg0: i32) -> (i32, i32) {
    %c0_i32 = arith.constant 0 : i32
    %c0_i32_0 = arith.constant 0 : i32
    %c0_i32_1 = arith.constant 0 : i32
    return %c0_i32, %c0_i32_0 : i32, i32
  }
  func.func @transform_4(%arg0: i32) -> (i32, i32) {
    %c0_i32 = arith.constant 0 : i32
    %c0_i32_0 = arith.constant 0 : i32
    %c0_i32_1 = arith.constant 0 : i32
    return %c0_i32, %c0_i32_0 : i32, i32
  }
  func.func @transform_5(%arg0: i32) -> (i32, i32) {
    %c0_i32 = arith.constant 0 : i32
    %c0_i32_0 = arith.constant 0 : i32
    %c0_i32_1 = arith.constant 0 : i32
    return %c0_i32, %c0_i32_0 : i32, i32
  }
  func.func @transform_6(%arg0: i32) -> (i32, i32) {
    %c0_i32 = arith.constant 0 : i32
    %c0_i32_0 = arith.constant 0 : i32
    %c0_i32_1 = arith.constant 0 : i32
    return %c0_i32, %c0_i32_0 : i32, i32
  }
  func.func @transform_7(%arg0: i32) -> (i32, i32) {
    %c0_i32 = arith.constant 0 : i32
    %c0_i32_0 = arith.constant 0 : i32
    %c0_i32_1 = arith.constant 0 : i32
    return %c0_i32, %c0_i32_0 : i32, i32
  }
  func.func @transform_8(%arg0: i32) -> (i32, i32) {
    %c0_i32 = arith.constant 0 : i32
    %c0_i32_0 = arith.constant 0 : i32
    %c0_i32_1 = arith.constant 0 : i32
    return %c0_i32, %c0_i32_0 : i32, i32
  }
  func.func @transform_9(%arg0: i32) -> (i32, i32) {
    %c0_i32 = arith.constant 0 : i32
    %c0_i32_0 = arith.constant 0 : i32
    %c0_i32_1 = arith.constant 0 : i32
    return %c0_i32, %c0_i32_0 : i32, i32
  }
  func.func @transform_10(%arg0: i32) -> (i32, i32) {
    %c0_i32 = arith.constant 0 : i32
    %c0_i32_0 = arith.constant 0 : i32
    %c0_i32_1 = arith.constant 0 : i32
    return %c0_i32, %c0_i32_0 : i32, i32
  }
  func.func @transform_11(%arg0: i32) -> (i32, i32) {
    %c0_i32 = arith.constant 0 : i32
    %c0_i32_0 = arith.constant 0 : i32
    %c0_i32_1 = arith.constant 0 : i32
    return %c0_i32, %c0_i32_0 : i32, i32
  }
  func.func @transform_12(%arg0: i32) -> (i32, i32) {
    %c0_i32 = arith.constant 0 : i32
    %c0_i32_0 = arith.constant 0 : i32
    %c0_i32_1 = arith.constant 0 : i32
    return %c0_i32, %c0_i32_0 : i32, i32
  }
  func.func @transform_13(%arg0: i32) -> (i32, i32) {
    %c0_i32 = arith.constant 0 : i32
    %c0_i32_0 = arith.constant 0 : i32
    %c0_i32_1 = arith.constant 0 : i32
    return %c0_i32, %c0_i32_0 : i32, i32
  }
  func.func @transform_14(%arg0: i32) -> (i32, i32, i32) {
    %c0_i32 = arith.constant 0 : i32
    %c0_i32_0 = arith.constant 0 : i32
    %c0_i32_1 = arith.constant 0 : i32
    return %arg0, %c0_i32, %c0_i32_0 : i32, i32, i32
  }
}

</mosaic_0001>

<llo_original>
// kernel: tpu_custom_call.1
$region0: #{tpu_custom_call.1}
  #allocation0 [shape = 'u32[]', space=smem, size = 0x4, offset = 0x4, fixed_abs, tag = 'smem constant byte address 0x4 - core index']
  #allocation1 [shape = 'u32[144,128]{1,0:T(1,128)}', space=vmem, size = 0x12000, scoped, tag = 'internal scratch']
  %s0 = inlined_call_operand.vmem [shape: f32[2,8,32], index: 0, kind: input, shape index: {}]
  %s1 = inlined_call_operand.vmem [shape: s32[2,8,8], index: 1, kind: input, shape index: {}]
  %s2 = inlined_call_operand.vmem [shape: f32[1,32], index: 2, kind: input, shape index: {}]
  %s3 = inlined_call_operand.vmem [shape: f32[1,32], index: 3, kind: input, shape index: {}]
  %s4 = inlined_call_operand.vmem [shape: bf16[32,96], index: 4, kind: input, shape index: {}]
  %s5 = inlined_call_operand.hbm [shape: f32[1,96], index: 5, kind: input, shape index: {}]
  %s6 = inlined_call_operand.hbm [shape: bf16[32,32], index: 6, kind: input, shape index: {}]
  %s7 = inlined_call_operand.hbm [shape: f32[1,32], index: 7, kind: input, shape index: {}]
  %s8 = inlined_call_operand.hbm [shape: f32[1,32], index: 8, kind: input, shape index: {}]
  %s9 = inlined_call_operand.hbm [shape: f32[1,32], index: 9, kind: input, shape index: {}]
  %s10 = inlined_call_operand.vmem [shape: bf16[32,64], index: 10, kind: input, shape index: {}]
  %s11 = inlined_call_operand.vmem [shape: f32[1,64], index: 11, kind: input, shape index: {}]
  %s12 = inlined_call_operand.vmem [shape: bf16[64,32], index: 12, kind: input, shape index: {}]
  %s13 = inlined_call_operand.vmem [shape: f32[1,32], index: 13, kind: input, shape index: {}]
  %s14 = inlined_call_operand.hbm [shape: f32[2,8,32], index: 14, kind: output, shape index: {}]
  %s15 = sld [smem:[#allocation0]]
  $region109: #{tpu_custom_call.1} parent=0
    _
  %s17 = ssub.s32 1, %s15
  %s18 = scalar_select 0, %s17, %s15
  $region1: #{tpu_custom_call.1} parent=0
    #allocation2 [shape = 'u8[512]{0}', space=vmem, size = 0x400, scoped, tag = 'input window, operand 5, single buffered']
    #allocation3 [shape = 's32[2]{0}', space=sflag, size = 0x8, scoped, tag = 'scoped memory for tpu_custom_call.1']
    #allocation4 [shape = 's32[2]{0}', space=sflag, size = 0x8, scoped, tag = 'scoped memory for tpu_custom_call.1']
    #allocation5 [shape = 'u8[8192]{0}', space=vmem, size = 0x2000, scoped, tag = 'input window, operand 6, single buffered']
    #allocation6 [shape = 's32[1]{0}', space=sflag, size = 0x4, scoped, tag = 'scoped memory for tpu_custom_call.1']
    #allocation7 [shape = 'u8[512]{0}', space=vmem, size = 0x400, scoped, tag = 'input window, operand 7, single buffered']
    #allocation8 [shape = 'u8[512]{0}', space=vmem, size = 0x400, scoped, tag = 'input window, operand 8, single buffered']
    #allocation9 [shape = 's32[1]{0}', space=sflag, size = 0x4, scoped, tag = 'scoped memory for tpu_custom_call.1']
    #allocation10 [shape = 'u8[512]{0}', space=vmem, size = 0x400, scoped, tag = 'input window, operand 9, single buffered']
    #allocation11 [shape = 'u8[8192]{0}', space=vmem, size = 0x2000, scoped, tag = 'output window, operand 0']
    %19 = vsyncpa [#allocation3], 0
    %20 = vsyncpa [#allocation6], 0
    %21 = vsyncpa [#allocation9], 0
    %22 = vsyncpa [#allocation4], 0
    %s23 = scalar_lea.sflag [#allocation4], 1
    %24 = vsyncpa %s23, 0
    loop: start=0, step=1, limit=4
    $region2: #{tpu_custom_call.1} parent=1 // loop_pre_header
      _
    $region3: #{tpu_custom_call.1} parent=1 // loop_header
      %s26 = sphi 0, %s30
      %p27 = scmp.ge.s32.totalorder %s26, 4
      %s36 = sphi 0, %s38
      %s39 = sphi 0, %s36
      %s40 = sphi 0, %s39
      %s56 = sphi 0, %s40
      %s62 = sphi 0, %s64
      %s65 = sphi 0, %s62
      %s66 = sphi 0, %s65
      %s82 = sphi 0, %s66
      %s86 = sphi 0, %s86
      %s88 = sphi 0, %s86
      %s89 = sphi 0, %s88
      %s103 = sphi 0, %s89
      %s107 = sphi 0, %s107
      %s109 = sphi 0, %s107
      %s110 = sphi 0, %s109
      %s124 = sphi 0, %s110
      %s128 = sphi 0, %s128
      %s130 = sphi 0, %s128
      %s131 = sphi 0, %s130
      %s145 = sphi 0, %s131
      %s149 = sphi 0, %s149
      %s151 = sphi 0, %s149
      %s152 = sphi 0, %s151
      %s166 = sphi 0, %s152
      %s170 = sphi 0, %s170
      %s172 = sphi 0, %s170
      %s173 = sphi 0, %s172
      %s187 = sphi 0, %s173
      %s191 = sphi 0, %s191
      %s193 = sphi 0, %s191
      %s194 = sphi 0, %s193
      %s208 = sphi 0, %s194
      %s212 = sphi 0, %s212
      %s214 = sphi 0, %s212
      %s215 = sphi 0, %s214
      %s229 = sphi 0, %s215
      %s233 = sphi 0, %s233
      %s235 = sphi 0, %s233
      %s236 = sphi 0, %s235
      %s250 = sphi 0, %s236
      %s254 = sphi 0, %s254
      %s256 = sphi 0, %s254
      %s257 = sphi 0, %s256
      %s271 = sphi 0, %s257
      %s275 = sphi 0, %s275
      %s277 = sphi 0, %s275
      %s278 = sphi 0, %s277
      %s292 = sphi 0, %s278
      %s296 = sphi 0, %s296
      %s298 = sphi 0, %s296
      %s299 = sphi 0, %s298
      %s313 = sphi 0, %s299
      %s317 = sphi 0, %s317
      %s319 = sphi 0, %s317
      %s320 = sphi 0, %s319
      %s334 = sphi 0, %s320
      %s340 = sphi 0, %s342
      %s343 = sphi 0, %s340
      %s344 = sphi 0, %s343
      %s360 = sphi 0, %s344
    $region4: #{tpu_custom_call.1} parent=1 // loop_header_branch
      %29 = sbr.rel (%p27) target = $region8
    $region5: #{tpu_custom_call.1} parent=1 // loop_body
      %s31 = ssub.s32 %s26, 1
      %s32 = ssub.s32 %s26, 2
      %s33 = sadd.s32 %s26, 1
      %s34 = ssub.s32 %s26, %s33
      %p35 = scmp.eq.s32.totalorder %s34, 0
      %s37 = sadd.s32 %s36, 1
      %s38 = scalar_select %p35, %s36, %s37
      %p41 = pneg %p35
      %p42 = scmp.eq.s32.totalorder %s26, 1
      %p43 = por %p41, %p42
      %p44 = scmp.ne.s32.totalorder %s36, %s39
      %p45 = scmp.eq.s32.totalorder %s26, 0
      %p46 = por %p44, %p45
      %p47 = scmp.ne.s32.totalorder %s36, %s39
      %p48 = scmp.eq.s32.totalorder %s31, 1
      %p49 = por %p47, %p48
      %p50 = scmp.ne.s32.totalorder %s39, %s40
      %p51 = scmp.eq.s32.totalorder %s31, 0
      %p52 = por %p50, %p51
      %p53 = scmp.ne.s32.totalorder %s39, %s40
      %p54 = scmp.eq.s32.totalorder %s32, 1
      %p55 = por %p53, %p54
      %p57 = scmp.ne.s32.totalorder %s40, %s56
      %p58 = scmp.eq.s32.totalorder %s32, 0
      %p59 = por %p57, %p58
      %s60 = ssub.s32 %s26, %s33
      %p61 = scmp.eq.s32.totalorder %s60, 0
      %s63 = sadd.s32 %s62, 1
      %s64 = scalar_select %p61, %s62, %s63
      %p67 = pneg %p61
      %p68 = scmp.eq.s32.totalorder %s26, 1
      %p69 = por %p67, %p68
      %p70 = scmp.ne.s32.totalorder %s62, %s65
      %p71 = scmp.eq.s32.totalorder %s26, 0
      %p72 = por %p70, %p71
      %p73 = scmp.ne.s32.totalorder %s62, %s65
      %p74 = scmp.eq.s32.totalorder %s31, 1
      %p75 = por %p73, %p74
      %p76 = scmp.ne.s32.totalorder %s65, %s66
      %p77 = scmp.eq.s32.totalorder %s31, 0
      %p78 = por %p76, %p77
      %p79 = scmp.ne.s32.totalorder %s65, %s66
      %p80 = scmp.eq.s32.totalorder %s32, 1
      %p81 = por %p79, %p80
      %p83 = scmp.ne.s32.totalorder %s66, %s82
      %p84 = scmp.eq.s32.totalorder %s32, 0
      %p85 = por %p83, %p84
      %s87 = sadd.s32 %s86, 1
      %p90 = scmp.eq.s32.totalorder %s26, 1
      %p91 = scmp.ne.s32.totalorder %s86, %s88
      %p92 = scmp.eq.s32.totalorder %s26, 0
      %p93 = por %p91, %p92
      %p94 = scmp.ne.s32.totalorder %s86, %s88
      %p95 = scmp.eq.s32.totalorder %s31, 1
      %p96 = por %p94, %p95
      %p97 = scmp.ne.s32.totalorder %s88, %s89
      %p98 = scmp.eq.s32.totalorder %s31, 0
      %p99 = por %p97, %p98
      %p100 = scmp.ne.s32.totalorder %s88, %s89
      %p101 = scmp.eq.s32.totalorder %s32, 1
      %p102 = por %p100, %p101
      %p104 = scmp.ne.s32.totalorder %s89, %s103
      %p105 = scmp.eq.s32.totalorder %s32, 0
      %p106 = por %p104, %p105
      %s108 = sadd.s32 %s107, 1
      %p111 = scmp.eq.s32.totalorder %s26, 1
      %p112 = scmp.ne.s32.totalorder %s107, %s109
      %p113 = scmp.eq.s32.totalorder %s26, 0
      %p114 = por %p112, %p113
      %p115 = scmp.ne.s32.totalorder %s107, %s109
      %p116 = scmp.eq.s32.totalorder %s31, 1
      %p117 = por %p115, %p116
      %p118 = scmp.ne.s32.totalorder %s109, %s110
      %p119 = scmp.eq.s32.totalorder %s31, 0
      %p120 = por %p118, %p119
      %p121 = scmp.ne.s32.totalorder %s109, %s110
      %p122 = scmp.eq.s32.totalorder %s32, 1
      %p123 = por %p121, %p122
      %p125 = scmp.ne.s32.totalorder %s110, %s124
      %p126 = scmp.eq.s32.totalorder %s32, 0
      %p127 = por %p125, %p126
      %s129 = sadd.s32 %s128, 1
      %p132 = scmp.eq.s32.totalorder %s26, 1
      %p133 = scmp.ne.s32.totalorder %s128, %s130
      %p134 = scmp.eq.s32.totalorder %s26, 0
      %p135 = por %p133, %p134
      %p136 = scmp.ne.s32.totalorder %s128, %s130
      %p137 = scmp.eq.s32.totalorder %s31, 1
      %p138 = por %p136, %p137
      %p139 = scmp.ne.s32.totalorder %s130, %s131
      %p140 = scmp.eq.s32.totalorder %s31, 0
      %p141 = por %p139, %p140
      %p142 = scmp.ne.s32.totalorder %s130, %s131
      %p143 = scmp.eq.s32.totalorder %s32, 1
      %p144 = por %p142, %p143
      %p146 = scmp.ne.s32.totalorder %s131, %s145
      %p147 = scmp.eq.s32.totalorder %s32, 0
      %p148 = por %p146, %p147
      %s150 = sadd.s32 %s149, 1
      %p153 = scmp.eq.s32.totalorder %s26, 1
      %p154 = scmp.ne.s32.totalorder %s149, %s151
      %p155 = scmp.eq.s32.totalorder %s26, 0
      %p156 = por %p154, %p155
      %p157 = scmp.ne.s32.totalorder %s149, %s151
      %p158 = scmp.eq.s32.totalorder %s31, 1
      %p159 = por %p157, %p158
      %p160 = scmp.ne.s32.totalorder %s151, %s152
      %p161 = scmp.eq.s32.totalorder %s31, 0
      %p162 = por %p160, %p161
      %p163 = scmp.ne.s32.totalorder %s151, %s152
      %p164 = scmp.eq.s32.totalorder %s32, 1
      %p165 = por %p163, %p164
      %p167 = scmp.ne.s32.totalorder %s152, %s166
      %p168 = scmp.eq.s32.totalorder %s32, 0
      %p169 = por %p167, %p168
      %s171 = sadd.s32 %s170, 1
      %p174 = scmp.eq.s32.totalorder %s26, 1
      %p175 = scmp.ne.s32.totalorder %s170, %s172
      %p176 = scmp.eq.s32.totalorder %s26, 0
      %p177 = por %p175, %p176
      %p178 = scmp.ne.s32.totalorder %s170, %s172
      %p179 = scmp.eq.s32.totalorder %s31, 1
      %p180 = por %p178, %p179
      %p181 = scmp.ne.s32.totalorder %s172, %s173
      %p182 = scmp.eq.s32.totalorder %s31, 0
      %p183 = por %p181, %p182
      %p184 = scmp.ne.s32.totalorder %s172, %s173
      %p185 = scmp.eq.s32.totalorder %s32, 1
      %p186 = por %p184, %p185
      %p188 = scmp.ne.s32.totalorder %s173, %s187
      %p189 = scmp.eq.s32.totalorder %s32, 0
      %p190 = por %p188, %p189
      %s192 = sadd.s32 %s191, 1
      %p195 = scmp.eq.s32.totalorder %s26, 1
      %p196 = scmp.ne.s32.totalorder %s191, %s193
      %p197 = scmp.eq.s32.totalorder %s26, 0
      %p198 = por %p196, %p197
      %p199 = scmp.ne.s32.totalorder %s191, %s193
      %p200 = scmp.eq.s32.totalorder %s31, 1
      %p201 = por %p199, %p200
      %p202 = scmp.ne.s32.totalorder %s193, %s194
      %p203 = scmp.eq.s32.totalorder %s31, 0
      %p204 = por %p202, %p203
      %p205 = scmp.ne.s32.totalorder %s193, %s194
      %p206 = scmp.eq.s32.totalorder %s32, 1
      %p207 = por %p205, %p206
      %p209 = scmp.ne.s32.totalorder %s194, %s208
      %p210 = scmp.eq.s32.totalorder %s32, 0
      %p211 = por %p209, %p210
      %s213 = sadd.s32 %s212, 1
      %p216 = scmp.eq.s32.totalorder %s26, 1
      %p217 = scmp.ne.s32.totalorder %s212, %s214
      %p218 = scmp.eq.s32.totalorder %s26, 0
      %p219 = por %p217, %p218
      %p220 = scmp.ne.s32.totalorder %s212, %s214
      %p221 = scmp.eq.s32.totalorder %s31, 1
      %p222 = por %p220, %p221
      %p223 = scmp.ne.s32.totalorder %s214, %s215
      %p224 = scmp.eq.s32.totalorder %s31, 0
      %p225 = por %p223, %p224
      %p226 = scmp.ne.s32.totalorder %s214, %s215
      %p227 = scmp.eq.s32.totalorder %s32, 1
      %p228 = por %p226, %p227
      %p230 = scmp.ne.s32.totalorder %s215, %s229
      %p231 = scmp.eq.s32.totalorder %s32, 0
      %p232 = por %p230, %p231
      %s234 = sadd.s32 %s233, 1
      %p237 = scmp.eq.s32.totalorder %s26, 1
      %p238 = scmp.ne.s32.totalorder %s233, %s235
      %p239 = scmp.eq.s32.totalorder %s26, 0
      %p240 = por %p238, %p239
      %p241 = scmp.ne.s32.totalorder %s233, %s235
      %p242 = scmp.eq.s32.totalorder %s31, 1
      %p243 = por %p241, %p242
      %p244 = scmp.ne.s32.totalorder %s235, %s236
      %p245 = scmp.eq.s32.totalorder %s31, 0
      %p246 = por %p244, %p245
      %p247 = scmp.ne.s32.totalorder %s235, %s236
      %p248 = scmp.eq.s32.totalorder %s32, 1
      %p249 = por %p247, %p248
      %p251 = scmp.ne.s32.totalorder %s236, %s250
      %p252 = scmp.eq.s32.totalorder %s32, 0
      %p253 = por %p251, %p252
      %s255 = sadd.s32 %s254, 1
      %p258 = scmp.eq.s32.totalorder %s26, 1
      %p259 = scmp.ne.s32.totalorder %s254, %s256
      %p260 = scmp.eq.s32.totalorder %s26, 0
      %p261 = por %p259, %p260
      %p262 = scmp.ne.s32.totalorder %s254, %s256
      %p263 = scmp.eq.s32.totalorder %s31, 1
      %p264 = por %p262, %p263
      %p265 = scmp.ne.s32.totalorder %s256, %s257
      %p266 = scmp.eq.s32.totalorder %s31, 0
      %p267 = por %p265, %p266
      %p268 = scmp.ne.s32.totalorder %s256, %s257
      %p269 = scmp.eq.s32.totalorder %s32, 1
      %p270 = por %p268, %p269
      %p272 = scmp.ne.s32.totalorder %s257, %s271
      %p273 = scmp.eq.s32.totalorder %s32, 0
      %p274 = por %p272, %p273
      %s276 = sadd.s32 %s275, 1
      %p279 = scmp.eq.s32.totalorder %s26, 1
      %p280 = scmp.ne.s32.totalorder %s275, %s277
      %p281 = scmp.eq.s32.totalorder %s26, 0
      %p282 = por %p280, %p281
      %p283 = scmp.ne.s32.totalorder %s275, %s277
      %p284 = scmp.eq.s32.totalorder %s31, 1
      %p285 = por %p283, %p284
      %p286 = scmp.ne.s32.totalorder %s277, %s278
      %p287 = scmp.eq.s32.totalorder %s31, 0
      %p288 = por %p286, %p287
      %p289 = scmp.ne.s32.totalorder %s277, %s278
      %p290 = scmp.eq.s32.totalorder %s32, 1
      %p291 = por %p289, %p290
      %p293 = scmp.ne.s32.totalorder %s278, %s292
      %p294 = scmp.eq.s32.totalorder %s32, 0
      %p295 = por %p293, %p294
      %s297 = sadd.s32 %s296, 1
      %p300 = scmp.eq.s32.totalorder %s26, 1
      %p301 = scmp.ne.s32.totalorder %s296, %s298
      %p302 = scmp.eq.s32.totalorder %s26, 0
      %p303 = por %p301, %p302
      %p304 = scmp.ne.s32.totalorder %s296, %s298
      %p305 = scmp.eq.s32.totalorder %s31, 1
      %p306 = por %p304, %p305
      %p307 = scmp.ne.s32.totalorder %s298, %s299
      %p308 = scmp.eq.s32.totalorder %s31, 0
      %p309 = por %p307, %p308
      %p310 = scmp.ne.s32.totalorder %s298, %s299
      %p311 = scmp.eq.s32.totalorder %s32, 1
      %p312 = por %p310, %p311
      %p314 = scmp.ne.s32.totalorder %s299, %s313
      %p315 = scmp.eq.s32.totalorder %s32, 0
      %p316 = por %p314, %p315
      %s318 = sadd.s32 %s317, 1
      %p321 = scmp.eq.s32.totalorder %s26, 1
      %p322 = scmp.ne.s32.totalorder %s317, %s319
      %p323 = scmp.eq.s32.totalorder %s26, 0
      %p324 = por %p322, %p323
      %p325 = scmp.ne.s32.totalorder %s317, %s319
      %p326 = scmp.eq.s32.totalorder %s31, 1
      %p327 = por %p325, %p326
      %p328 = scmp.ne.s32.totalorder %s319, %s320
      %p329 = scmp.eq.s32.totalorder %s31, 0
      %p330 = por %p328, %p329
      %p331 = scmp.ne.s32.totalorder %s319, %s320
      %p332 = scmp.eq.s32.totalorder %s32, 1
      %p333 = por %p331, %p332
      %p335 = scmp.ne.s32.totalorder %s320, %s334
      %p336 = scmp.eq.s32.totalorder %s32, 0
      %p337 = por %p335, %p336
      %s338 = ssub.s32 %s26, %s33
      %p339 = scmp.eq.s32.totalorder %s338, 0
      %s341 = sadd.s32 %s340, 1
      %s342 = scalar_select %p339, %s340, %s341
      %p345 = pneg %p339
      %p346 = scmp.eq.s32.totalorder %s26, 1
      %p347 = por %p345, %p346
      %p348 = scmp.ne.s32.totalorder %s340, %s343
      %p349 = scmp.eq.s32.totalorder %s26, 0
      %p350 = por %p348, %p349
      %p351 = scmp.ne.s32.totalorder %s340, %s343
      %p352 = scmp.eq.s32.totalorder %s31, 1
      %p353 = por %p351, %p352
      %p354 = scmp.ne.s32.totalorder %s343, %s344
      %p355 = scmp.eq.s32.totalorder %s31, 0
      %p356 = por %p354, %p355
      %p357 = scmp.ne.s32.totalorder %s343, %s344
      %p358 = scmp.eq.s32.totalorder %s32, 1
      %p359 = por %p357, %p358
      %p361 = scmp.ne.s32.totalorder %s344, %s360
      %p362 = scmp.eq.s32.totalorder %s32, 0
      %p363 = por %p361, %p362
      %p364 = scmp.le.s32.totalorder 1, %s26
      %p365 = scmp.lt.s32.totalorder %s26, 3
      %p366 = pnand %p364, %p365
      %p367 = pneg %p366
      // Predicated region
      $region9: #{tpu_custom_call.1} parent=5 // pred_check
        _
      $region10: #{tpu_custom_call.1} parent=5 // pred_check_branch
        %369 = sbr.rel (%p366) target = $region12
      $region11: #{tpu_custom_call.1} parent=5 // pred_region
        %s370 = ssub.s32 %s26, 1
        // Predicated region
        $region13: #{tpu_custom_call.1} parent=11 // pred_check
          %p371 = pneg %p99
        $region14: #{tpu_custom_call.1} parent=11 // pred_check_branch
          %373 = sbr.rel (%p371) target = $region16
        $region15: #{tpu_custom_call.1} parent=11 // pred_region
          _
        $region16: #{tpu_custom_call.1} parent=11 // pred_fallthru
          _
        // Predicated region
        $region17: #{tpu_custom_call.1} parent=11 // pred_check
          %p374 = pneg %p120
        $region18: #{tpu_custom_call.1} parent=11 // pred_check_branch
          %376 = sbr.rel (%p374) target = $region20
        $region19: #{tpu_custom_call.1} parent=11 // pred_region
          _
        $region20: #{tpu_custom_call.1} parent=11 // pred_fallthru
          _
        // Predicated region
        $region21: #{tpu_custom_call.1} parent=11 // pred_check
          %p377 = pneg %p141
        $region22: #{tpu_custom_call.1} parent=11 // pred_check_branch
          %379 = sbr.rel (%p377) target = $region24
        $region23: #{tpu_custom_call.1} parent=11 // pred_region
          _
        $region24: #{tpu_custom_call.1} parent=11 // pred_fallthru
          _
        // Predicated region
        $region25: #{tpu_custom_call.1} parent=11 // pred_check
          %p380 = pneg %p162
        $region26: #{tpu_custom_call.1} parent=11 // pred_check_branch
          %382 = sbr.rel (%p380) target = $region28
        $region27: #{tpu_custom_call.1} parent=11 // pred_region
          %s384 = ssub.s32 16, 16
          %385 = vsyncadd [#allocation3], %s384
          %s387 = sshll.u32 [#allocation2], 4
          %s388 = int_to_ptr.vmem [resolvable:$true] %s387
          %390 = dma.hbm_to_vmem [thread:$0]  %s5, 16, %s388, [#allocation3]
        $region28: #{tpu_custom_call.1} parent=11 // pred_fallthru
          _
        // Predicated region
        $region29: #{tpu_custom_call.1} parent=11 // pred_check
          %p391 = pneg %p183
        $region30: #{tpu_custom_call.1} parent=11 // pred_check_branch
          %393 = sbr.rel (%p391) target = $region32
        $region31: #{tpu_custom_call.1} parent=11 // pred_region
          %s395 = ssub.s32 256, 256
          %396 = vsyncadd [#allocation6], %s395
          %s397 = sshll.u32 [#allocation5], 4
          %s398 = int_to_ptr.vmem [resolvable:$true] %s397
          %403 = dma.hbm_to_vmem [thread:$0]  %s6, 256, %s398, [#allocation6], 64, 64, 4
        $region32: #{tpu_custom_call.1} parent=11 // pred_fallthru
          _
        // Predicated region
        $region33: #{tpu_custom_call.1} parent=11 // pred_check
          %p404 = pneg %p204
        $region34: #{tpu_custom_call.1} parent=11 // pred_check_branch
          %406 = sbr.rel (%p404) target = $region36
        $region35: #{tpu_custom_call.1} parent=11 // pred_region
          %s408 = ssub.s32 16, 16
          %409 = vsyncadd [#allocation6], %s408
          %s411 = sshll.u32 [#allocation7], 4
          %s412 = int_to_ptr.vmem [resolvable:$true] %s411
          %414 = dma.hbm_to_vmem [thread:$0]  %s7, 16, %s412, [#allocation6]
        $region36: #{tpu_custom_call.1} parent=11 // pred_fallthru
          _
        // Predicated region
        $region37: #{tpu_custom_call.1} parent=11 // pred_check
          %p415 = pneg %p225
        $region38: #{tpu_custom_call.1} parent=11 // pred_check_branch
          %417 = sbr.rel (%p415) target = $region40
        $region39: #{tpu_custom_call.1} parent=11 // pred_region
          %s419 = ssub.s32 16, 16
          %420 = vsyncadd [#allocation9], %s419
          %s422 = sshll.u32 [#allocation8], 4
          %s423 = int_to_ptr.vmem [resolvable:$true] %s422
          %425 = dma.hbm_to_vmem [thread:$0]  %s8, 16, %s423, [#allocation9]
        $region40: #{tpu_custom_call.1} parent=11 // pred_fallthru
          _
        // Predicated region
        $region41: #{tpu_custom_call.1} parent=11 // pred_check
          %p426 = pneg %p246
        $region42: #{tpu_custom_call.1} parent=11 // pred_check_branch
          %428 = sbr.rel (%p426) target = $region44
        $region43: #{tpu_custom_call.1} parent=11 // pred_region
          %s430 = ssub.s32 16, 16
          %431 = vsyncadd [#allocation9], %s430
          %s433 = sshll.u32 [#allocation10], 4
          %s434 = int_to_ptr.vmem [resolvable:$true] %s433
          %436 = dma.hbm_to_vmem [thread:$0]  %s9, 16, %s434, [#allocation9]
        $region44: #{tpu_custom_call.1} parent=11 // pred_fallthru
          _
        // Predicated region
        $region45: #{tpu_custom_call.1} parent=11 // pred_check
          %p437 = pneg %p267
        $region46: #{tpu_custom_call.1} parent=11 // pred_check_branch
          %439 = sbr.rel (%p437) target = $region48
        $region47: #{tpu_custom_call.1} parent=11 // pred_region
          _
        $region48: #{tpu_custom_call.1} parent=11 // pred_fallthru
          _
        // Predicated region
        $region49: #{tpu_custom_call.1} parent=11 // pred_check
          %p440 = pneg %p288
        $region50: #{tpu_custom_call.1} parent=11 // pred_check_branch
          %442 = sbr.rel (%p440) target = $region52
        $region51: #{tpu_custom_call.1} parent=11 // pred_region
          _
        $region52: #{tpu_custom_call.1} parent=11 // pred_fallthru
          _
        // Predicated region
        $region53: #{tpu_custom_call.1} parent=11 // pred_check
          %p443 = pneg %p309
        $region54: #{tpu_custom_call.1} parent=11 // pred_check_branch
          %445 = sbr.rel (%p443) target = $region56
        $region55: #{tpu_custom_call.1} parent=11 // pred_region
          _
        $region56: #{tpu_custom_call.1} parent=11 // pred_fallthru
          _
        // Predicated region
        $region57: #{tpu_custom_call.1} parent=11 // pred_check
          %p446 = pneg %p330
        $region58: #{tpu_custom_call.1} parent=11 // pred_check_branch
          %448 = sbr.rel (%p446) target = $region60
        $region59: #{tpu_custom_call.1} parent=11 // pred_region
          _
        $region60: #{tpu_custom_call.1} parent=11 // pred_fallthru
          _
      $region12: #{tpu_custom_call.1} parent=5 // pred_fallthru
        _
      %p449 = scmp.lt.s32.totalorder %s26, 2
      // Predicated region
      $region61: #{tpu_custom_call.1} parent=5 // pred_check
        %p450 = pneg %p449
      $region62: #{tpu_custom_call.1} parent=5 // pred_check_branch
        %452 = sbr.rel (%p450) target = $region64
      $region63: #{tpu_custom_call.1} parent=5 // pred_region
        // Predicated region
        $region65: #{tpu_custom_call.1} parent=63 // pred_check
          %p453 = pneg %p46
        $region66: #{tpu_custom_call.1} parent=63 // pred_check_branch
          %455 = sbr.rel (%p453) target = $region68
        $region67: #{tpu_custom_call.1} parent=63 // pred_region
          %p456 = scmp.lt.s32.totalorder %s26, 1
          %s457 = scalar_select %p456, %s26, 1
          %s458 = smul.addr %s457, 8
          %s459 = scalar_lea.vmem %s0, %s458
        $region68: #{tpu_custom_call.1} parent=63 // pred_fallthru
          _
        // Predicated region
        $region69: #{tpu_custom_call.1} parent=63 // pred_check
          %p460 = pneg %p72
        $region70: #{tpu_custom_call.1} parent=63 // pred_check_branch
          %462 = sbr.rel (%p460) target = $region72
        $region71: #{tpu_custom_call.1} parent=63 // pred_region
          %p463 = scmp.lt.s32.totalorder %s26, 1
          %s464 = scalar_select %p463, %s26, 1
          %s465 = smul.addr %s464, 8
          %s466 = scalar_lea.vmem %s1, %s465
        $region72: #{tpu_custom_call.1} parent=63 // pred_fallthru
          _
      $region64: #{tpu_custom_call.1} parent=5 // pred_fallthru
        _
      %p467 = scmp.le.s32.totalorder 1, %s26
      %p468 = scmp.lt.s32.totalorder %s26, 3
      %p469 = pnand %p467, %p468
      %p470 = pneg %p469
      // Predicated region
      $region73: #{tpu_custom_call.1} parent=5 // pred_check
        _
      $region74: #{tpu_custom_call.1} parent=5 // pred_check_branch
        %472 = sbr.rel (%p469) target = $region76
      $region75: #{tpu_custom_call.1} parent=5 // pred_region
        %s473 = ssub.s32 %s26, 1
        // Predicated region
        $region77: #{tpu_custom_call.1} parent=75 // pred_check
          %p474 = pneg %p162
        $region78: #{tpu_custom_call.1} parent=75 // pred_check_branch
          %476 = sbr.rel (%p474) target = $region80
        $region79: #{tpu_custom_call.1} parent=75 // pred_region
          %477 = dma.done [#allocation3], 16
        $region80: #{tpu_custom_call.1} parent=75 // pred_fallthru
          _
        // Predicated region
        $region81: #{tpu_custom_call.1} parent=75 // pred_check
          %p478 = pneg %p183
        $region82: #{tpu_custom_call.1} parent=75 // pred_check_branch
          %480 = sbr.rel (%p478) target = $region84
        $region83: #{tpu_custom_call.1} parent=75 // pred_region
          %481 = dma.done [#allocation6], 256
        $region84: #{tpu_custom_call.1} parent=75 // pred_fallthru
          _
        // Predicated region
        $region85: #{tpu_custom_call.1} parent=75 // pred_check
          %p482 = pneg %p204
        $region86: #{tpu_custom_call.1} parent=75 // pred_check_branch
          %484 = sbr.rel (%p482) target = $region88
        $region87: #{tpu_custom_call.1} parent=75 // pred_region
          %485 = dma.done [#allocation6], 16
        $region88: #{tpu_custom_call.1} parent=75 // pred_fallthru
          _
        // Predicated region
        $region89: #{tpu_custom_call.1} parent=75 // pred_check
          %p486 = pneg %p225
        $region90: #{tpu_custom_call.1} parent=75 // pred_check_branch
          %488 = sbr.rel (%p486) target = $region92
        $region91: #{tpu_custom_call.1} parent=75 // pred_region
          %489 = dma.done [#allocation9], 16
        $region92: #{tpu_custom_call.1} parent=75 // pred_fallthru
          _
        // Predicated region
        $region93: #{tpu_custom_call.1} parent=75 // pred_check
          %p490 = pneg %p246
        $region94: #{tpu_custom_call.1} parent=75 // pred_check_branch
          %492 = sbr.rel (%p490) target = $region96
        $region95: #{tpu_custom_call.1} parent=75 // pred_region
          %493 = dma.done [#allocation9], 16
        $region96: #{tpu_custom_call.1} parent=75 // pred_fallthru
          _
        %p494 = scmp.lt.s32.totalorder %s31, 1
        %s495 = scalar_select %p494, %s31, 1
        %s496 = smul.addr %s495, 8
        %s497 = scalar_lea.vmem %s0, %s496
        %p498 = pneg %p52
        %p499 = pneg %p49
        %p500 = scmp.lt.s32.totalorder %s31, 1
        %s501 = scalar_select %p500, %s31, 1
        %s502 = smul.addr %s501, 8
        %s503 = scalar_lea.vmem %s1, %s502
        %p504 = pneg %p78
        %p505 = pneg %p75
        %p506 = pneg %p99
        %p507 = pneg %p96
        %p508 = pneg %p120
        %p509 = pneg %p117
        %p510 = pneg %p141
        %p511 = pneg %p138
        %p512 = pneg %p162
        %p513 = pneg %p159
        %p514 = pneg %p183
        %p515 = pneg %p180
        %p516 = pneg %p204
        %p517 = pneg %p201
        %p518 = pneg %p225
        %p519 = pneg %p222
        %p520 = pneg %p246
        %p521 = pneg %p243
        %p522 = pneg %p267
        %p523 = pneg %p264
        %p524 = pneg %p288
        %p525 = pneg %p285
        %p526 = pneg %p309
        %p527 = pneg %p306
        %p528 = pneg %p330
        %p529 = pneg %p327
        %p530 = pneg %p356
        %p531 = pneg %p353
        %s532 = sand.u32 %s343, 1
        %s533 = scalar_lea.sflag [#allocation4], %s532
        %s534 = sand.u32 %s343, 1
        %s535 = smul.addr %s534, 8
        %s536 = scalar_lea.vmem [#allocation11], %s535
        %p537 = scmp.lt.s32.totalorder %s31, 1
        %s538 = scalar_select %p537, %s31, 1
        %s539 = smul.addr %s538, 8
        %s540 = scalar_lea.vmem %s0, %s539
        %p541 = scmp.lt.s32.totalorder %s31, 1
        %s542 = scalar_select %p541, %s31, 1
        %s543 = smul.addr %s542, 8
        %s544 = scalar_lea.vmem %s1, %s543
        %v546 = vld [vmem:[%s540] sm:$0xff]
        %v547 = vld [vmem:[%s544] sm:$0xff]
        %vm548 = vcmp.ne.s32.totalorder %v547, 0
        %v549 = vsel %vm548, -1e+18, 0.0
        %v550 = vld [vmem:[%s2] sm:$0x1]
        %v551 = vld [vmem:[%s3] sm:$0x1]
        %vm552 = vcmask 261120
        %v553 = vsel %vm552, %v546, 0.0
        %554 = vadd.xlane.f32.xlu0 %v553
        %v555 = vpop.xlane.xlu0 %554
        %v556 = vrcp.pop 32.0
        %v557 = vmul.f32 %v555, %v556
        %v558 = vsub.f32 %v546, %v557
        %v559 = vmul.f32 %v558, %v558
        %v560 = vsel %vm552, %v559, 0.0
        %561 = vadd.xlane.f32.xlu0 %v560
        %v562 = vpop.xlane.xlu0 %561
        %v563 = vmul.f32 %v562, %v556
        %v564 = vadd.f32 %v563, 1e-06
        %v565 = vrsqrt.pop %v564
        %v566 = vmul.f32 %v558, %v565
        %v568 = vlaneseq
        %v569 = vshrl.u32 %v568, 7
        %v570 = vsub.s32 0, %v569
        %v571 = vrot.slane %v550, %v570
        %v573 = vmul.f32 %v566, %v571
        %v575 = vlaneseq
        %v576 = vshrl.u32 %v575, 7
        %v577 = vsub.s32 0, %v576
        %v578 = vrot.slane %v551, %v577
        %v580 = vadd.f32 %v573, %v578
        %v581 = vpack.c.bf16 %v580, %v580
        %v582 = vld [vmem:[%s4] sm:$0xf]
        %v583 = vld [vmem:[%s4 + $0x4] sm:$0xf]
        %v584 = vld [vmem:[%s4 + $0x8] sm:$0xf]
        %v585 = vld [vmem:[%s4 + $0xc] sm:$0xf]
        %v586 = vld [vmem:[#allocation2] sm:$0x1]
        %v588 = vlaneseq
        %v589 = vshrl.u32 %v588, 7
        %v590 = vsub.s32 0, %v589
        %v591 = vrot.slane %v586, %v590
        %v597 = vunpack.c.l.b16 %v582
        %v598 = vunpack.c.l.b16 %v583
        %v599 = vunpack.c.l.b16 %v584
        %v600 = vunpack.c.l.b16 %v585
        %v601 = vpack.c.b16 %v598, %v597
        %v602 = vpack.c.b16 %v600, %v599
        %v606 = vsel %vm552, %v581, 0
        %608 = vmatprep.subr.bf16.mxu0 0
        %609 = vmatpush1.bf16.msra.mxu0 %v601
        %610 = vmatprep.subr.bf16.mxu0 0
        %611 = vmatpush1.bf16.msra.mxu0 %v602
        %612 = vmatprep.subr.bf16.mxu0 0
        %613 = vmatpush1.bf16.msra.mxu0 0
        %614 = vmatprep.subr.bf16.mxu0 0
        %615 = vmatpush1.bf16.msra.mxu0 0
        %616 = vmatprep.subr.bf16.mxu0 0
        %617 = vmatpush1.bf16.msra.mxu0 0
        %618 = vmatprep.subr.bf16.mxu0 0
        %619 = vmatpush1.bf16.msra.mxu0 0
        %620 = vmatprep.subr.bf16.mxu0 0
        %621 = vmatpush1.bf16.msra.mxu0 0
        %622 = vmatprep.subr.bf16.mxu0 0
        %623 = vmatpush1.bf16.msra.mxu0 0
        %624 = vmatprep.subr.bf16.mxu0 0
        %625 = vmatpush1.bf16.msra.mxu0 0
        %626 = vmatprep.subr.bf16.mxu0 0
        %627 = vmatpush1.bf16.msra.mxu0 0
        %628 = vmatprep.subr.bf16.mxu0 0
        %629 = vmatpush1.bf16.msra.mxu0 0
        %630 = vmatprep.subr.bf16.mxu0 0
        %631 = vmatpush1.bf16.msra.mxu0 0
        %632 = vmatprep.subr.bf16.mxu0 0
        %633 = vmatpush1.bf16.msra.mxu0 0
        %634 = vmatprep.subr.bf16.mxu0 0
        %635 = vmatpush1.bf16.msra.mxu0 0
        %636 = vmatprep.subr.bf16.mxu0 0
        %637 = vmatpush1.bf16.msra.mxu0 0
        %638 = vmatprep.subr.bf16.mxu0 0
        %639 = vmatpush1.bf16.msra.mxu0 0
        %640 = vmatprep.mubr.bf16.mxu0 0
        %641 = vmatmul.mubr.bf16.gmra.mrb[0].mxu0 %v606
        %v642 = vpop.f32.mrb[0].mxu0
        %v643 = vadd.f32 %v591, %v642
        %v644 = vpop.f32.mrb[0].mxu0
        %v645 = vpop.f32.mrb[0].mxu0
        %v646 = vpop.f32.mrb[0].mxu0
        %647 = vdwg.mxu0
        %v648 = vpack.c.bf16 %v643, %v643
        %650 = vrot.lane.b32.xlu0 %v648, 120
        %v651 = vpop.permute.xlu0 %650
        %653 = vrot.lane.b32.xlu0 %v648, 112
        %v654 = vpop.permute.xlu0 %653
        %656 = vrot.lane.b32.xlu0 %v648, 104
        %v657 = vpop.permute.xlu0 %656
        %659 = vrot.lane.b32.xlu0 %v648, 96
        %v660 = vpop.permute.xlu0 %659
        %662 = vrot.lane.b32.xlu0 %v648, 88
        %v663 = vpop.permute.xlu0 %662
        %665 = vrot.lane.b32.xlu0 %v648, 80
        %v666 = vpop.permute.xlu0 %665
        %668 = vrot.lane.b32.xlu0 %v648, 72
        %v669 = vpop.permute.xlu0 %668
        %671 = vrot.lane.b32.xlu0 %v648, 64
        %v672 = vpop.permute.xlu0 %671
        %673 = vrot.lane.b32.xlu0 %v648, 56
        %v674 = vpop.permute.xlu0 %673
        %675 = vrot.lane.b32.xlu0 %v648, 48
        %v676 = vpop.permute.xlu0 %675
        %677 = vrot.lane.b32.xlu0 %v648, 40
        %v678 = vpop.permute.xlu0 %677
        %v679 = vcombine.low %v648, %v660
        %v681 = vunpack.c.l.s4 1983009808
        %v682 = vunpack.c.0.s8 %v681
        %v683 = vlaneseq
        %v684 = vshrl.u32 %v683, 7
        %v685 = vsub.s32 %v682, %v684
        %v686 = vrot.slane %v679, %v685
        %v687 = vcombine.low %v654, %v666
        %v689 = vunpack.c.l.s4 1983009808
        %v690 = vunpack.c.0.s8 %v689
        %v691 = vlaneseq
        %v692 = vshrl.u32 %v691, 7
        %v693 = vsub.s32 %v690, %v692
        %v694 = vrot.slane %v687, %v693
        %v697 = vunpack.c.l.s4 1983009808
        %v698 = vunpack.c.0.s8 %v697
        %v699 = vlaneseq
        %v700 = vshrl.u32 %v699, 7
        %v701 = vsub.s32 %v698, %v700
        %v702 = vrot.slane %v672, %v701
        %v705 = vunpack.c.l.s4 1983009808
        %v706 = vunpack.c.0.s8 %v705
        %v707 = vlaneseq
        %v708 = vshrl.u32 %v707, 7
        %v709 = vsub.s32 %v706, %v708
        %v710 = vrot.slane %v676, %v709
        %v711 = vcombine.low %v686, %v694
        %v712 = vcombine.high %v686, %v694
        %v714 = vunpack.c.l.s4 1934713408
        %v715 = vunpack.c.0.s8 %v714
        %v716 = vlaneseq
        %v717 = vshrl.u32 %v716, 7
        %v718 = vsub.s32 %v715, %v717
        %v719 = vrot.slane %v711, %v718
        %v721 = vunpack.c.l.s4 1934713408
        %v722 = vunpack.c.0.s8 %v721
        %v723 = vlaneseq
        %v724 = vshrl.u32 %v723, 7
        %v725 = vsub.s32 %v722, %v724
        %v726 = vrot.slane %v712, %v725
        %v727 = vcombine.low %v702, %v710
        %v728 = vcombine.high %v702, %v710
        %v730 = vunpack.c.l.s4 1934713408
        %v731 = vunpack.c.0.s8 %v730
        %v732 = vlaneseq
        %v733 = vshrl.u32 %v732, 7
        %v734 = vsub.s32 %v731, %v733
        %v735 = vrot.slane %v727, %v734
        %v737 = vunpack.c.l.s4 1934713408
        %v738 = vunpack.c.0.s8 %v737
        %v739 = vlaneseq
        %v740 = vshrl.u32 %v739, 7
        %v741 = vsub.s32 %v738, %v740
        %v742 = vrot.slane %v728, %v741
        %v743 = vcombine.low %v719, %v735
        %v744 = vcombine.high %v719, %v735
        %v745 = vcombine.low %v726, %v742
        %v746 = vcombine.high %v726, %v742
        %v747 = vcombine.low %v651, %v663
        %v749 = vunpack.c.l.s4 1983009808
        %v750 = vunpack.c.0.s8 %v749
        %v751 = vlaneseq
        %v752 = vshrl.u32 %v751, 7
        %v753 = vsub.s32 %v750, %v752
        %v754 = vrot.slane %v747, %v753
        %v755 = vcombine.low %v657, %v669
        %v757 = vunpack.c.l.s4 1983009808
        %v758 = vunpack.c.0.s8 %v757
        %v759 = vlaneseq
        %v760 = vshrl.u32 %v759, 7
        %v761 = vsub.s32 %v758, %v760
        %v762 = vrot.slane %v755, %v761
        %v765 = vunpack.c.l.s4 1983009808
        %v766 = vunpack.c.0.s8 %v765
        %v767 = vlaneseq
        %v768 = vshrl.u32 %v767, 7
        %v769 = vsub.s32 %v766, %v768
        %v770 = vrot.slane %v674, %v769
        %v773 = vunpack.c.l.s4 1983009808
        %v774 = vunpack.c.0.s8 %v773
        %v775 = vlaneseq
        %v776 = vshrl.u32 %v775, 7
        %v777 = vsub.s32 %v774, %v776
        %v778 = vrot.slane %v678, %v777
        %v779 = vcombine.low %v754, %v762
        %v780 = vcombine.high %v754, %v762
        %v782 = vunpack.c.l.s4 1934713408
        %v783 = vunpack.c.0.s8 %v782
        %v784 = vlaneseq
        %v785 = vshrl.u32 %v784, 7
        %v786 = vsub.s32 %v783, %v785
        %v787 = vrot.slane %v779, %v786
        %v789 = vunpack.c.l.s4 1934713408
        %v790 = vunpack.c.0.s8 %v789
        %v791 = vlaneseq
        %v792 = vshrl.u32 %v791, 7
        %v793 = vsub.s32 %v790, %v792
        %v794 = vrot.slane %v780, %v793
        %v795 = vcombine.low %v770, %v778
        %v796 = vcombine.high %v770, %v778
        %v798 = vunpack.c.l.s4 1934713408
        %v799 = vunpack.c.0.s8 %v798
        %v800 = vlaneseq
        %v801 = vshrl.u32 %v800, 7
        %v802 = vsub.s32 %v799, %v801
        %v803 = vrot.slane %v795, %v802
        %v805 = vunpack.c.l.s4 1934713408
        %v806 = vunpack.c.0.s8 %v805
        %v807 = vlaneseq
        %v808 = vshrl.u32 %v807, 7
        %v809 = vsub.s32 %v806, %v808
        %v810 = vrot.slane %v796, %v809
        %v811 = vcombine.low %v787, %v803
        %v812 = vcombine.high %v787, %v803
        %v813 = vcombine.low %v794, %v810
        %v814 = vcombine.high %v794, %v810
        %v817 = vpack.i.b16 %v811, %v743
        %v819 = vshrl.u32 %v743, 16
        %v820 = vshrl.u32 %v811, 16
        %v821 = vpack.i.b16 %v820, %v819
        %v825 = vpack.i.b16 %v812, %v744
        %v827 = vshrl.u32 %v744, 16
        %v828 = vshrl.u32 %v812, 16
        %v829 = vpack.i.b16 %v828, %v827
        %v833 = vpack.i.b16 %v813, %v745
        %v835 = vshrl.u32 %v745, 16
        %v836 = vshrl.u32 %v813, 16
        %v837 = vpack.i.b16 %v836, %v835
        %v841 = vpack.i.b16 %v814, %v746
        %v843 = vshrl.u32 %v746, 16
        %v844 = vshrl.u32 %v814, 16
        %v845 = vpack.i.b16 %v844, %v843
        %v847 = vcombine.low %v817, %v833
        %v848 = vcombine.high %v817, %v833
        %v850 = vunpack.c.l.s4 1983009808
        %v851 = vunpack.c.0.s8 %v850
        %v852 = vlaneseq
        %v853 = vshrl.u32 %v852, 7
        %v854 = vsub.s32 %v851, %v853
        %v855 = vrot.slane %v847, %v854
        %v857 = vunpack.c.l.s4 1983009808
        %v858 = vunpack.c.0.s8 %v857
        %v859 = vlaneseq
        %v860 = vshrl.u32 %v859, 7
        %v861 = vsub.s32 %v858, %v860
        %v862 = vrot.slane %v848, %v861
        %v863 = vcombine.low %v825, %v841
        %v864 = vcombine.high %v825, %v841
        %v866 = vunpack.c.l.s4 1983009808
        %v867 = vunpack.c.0.s8 %v866
        %v868 = vlaneseq
        %v869 = vshrl.u32 %v868, 7
        %v870 = vsub.s32 %v867, %v869
        %v871 = vrot.slane %v863, %v870
        %v873 = vunpack.c.l.s4 1983009808
        %v874 = vunpack.c.0.s8 %v873
        %v875 = vlaneseq
        %v876 = vshrl.u32 %v875, 7
        %v877 = vsub.s32 %v874, %v876
        %v878 = vrot.slane %v864, %v877
        %v879 = vcombine.low %v855, %v871
        %v880 = vcombine.high %v855, %v871
        %v882 = vunpack.c.l.s4 1934713408
        %v883 = vunpack.c.0.s8 %v882
        %v884 = vlaneseq
        %v885 = vshrl.u32 %v884, 7
        %v886 = vsub.s32 %v883, %v885
        %v887 = vrot.slane %v879, %v886
        %v889 = vunpack.c.l.s4 1934713408
        %v890 = vunpack.c.0.s8 %v889
        %v891 = vlaneseq
        %v892 = vshrl.u32 %v891, 7
        %v893 = vsub.s32 %v890, %v892
        %v894 = vrot.slane %v880, %v893
        %v895 = vcombine.low %v862, %v878
        %v897 = vunpack.c.l.s4 1934713408
        %v898 = vunpack.c.0.s8 %v897
        %v899 = vlaneseq
        %v900 = vshrl.u32 %v899, 7
        %v901 = vsub.s32 %v898, %v900
        %v902 = vrot.slane %v895, %v901
        %v903 = vcombine.high %v887, 0
        %v904 = vcombine.high %v894, 0
        %v905 = vcombine.high %v902, 0
        %v906 = vcombine.low %v821, %v837
        %v907 = vcombine.high %v821, %v837
        %v909 = vunpack.c.l.s4 1983009808
        %v910 = vunpack.c.0.s8 %v909
        %v911 = vlaneseq
        %v912 = vshrl.u32 %v911, 7
        %v913 = vsub.s32 %v910, %v912
        %v914 = vrot.slane %v906, %v913
        %v916 = vunpack.c.l.s4 1983009808
        %v917 = vunpack.c.0.s8 %v916
        %v918 = vlaneseq
        %v919 = vshrl.u32 %v918, 7
        %v920 = vsub.s32 %v917, %v919
        %v921 = vrot.slane %v907, %v920
        %v922 = vcombine.low %v829, %v845
        %v923 = vcombine.high %v829, %v845
        %v925 = vunpack.c.l.s4 1983009808
        %v926 = vunpack.c.0.s8 %v925
        %v927 = vlaneseq
        %v928 = vshrl.u32 %v927, 7
        %v929 = vsub.s32 %v926, %v928
        %v930 = vrot.slane %v922, %v929
        %v932 = vunpack.c.l.s4 1983009808
        %v933 = vunpack.c.0.s8 %v932
        %v934 = vlaneseq
        %v935 = vshrl.u32 %v934, 7
        %v936 = vsub.s32 %v933, %v935
        %v937 = vrot.slane %v923, %v936
        %v938 = vcombine.low %v914, %v930
        %v939 = vcombine.high %v914, %v930
        %v941 = vunpack.c.l.s4 1934713408
        %v942 = vunpack.c.0.s8 %v941
        %v943 = vlaneseq
        %v944 = vshrl.u32 %v943, 7
        %v945 = vsub.s32 %v942, %v944
        %v946 = vrot.slane %v938, %v945
        %v948 = vunpack.c.l.s4 1934713408
        %v949 = vunpack.c.0.s8 %v948
        %v950 = vlaneseq
        %v951 = vshrl.u32 %v950, 7
        %v952 = vsub.s32 %v949, %v951
        %v953 = vrot.slane %v939, %v952
        %v954 = vcombine.low %v921, %v937
        %v956 = vunpack.c.l.s4 1934713408
        %v957 = vunpack.c.0.s8 %v956
        %v958 = vlaneseq
        %v959 = vshrl.u32 %v958, 7
        %v960 = vsub.s32 %v957, %v959
        %v961 = vrot.slane %v954, %v960
        %v962 = vcombine.high %v946, 0
        %v963 = vcombine.high %v953, 0
        %v964 = vcombine.high %v961, 0
        %v967 = vpack.i.b16 %v946, %v887
        %v968 = vshrl.u32 %v887, 16
        %v969 = vshrl.u32 %v946, 16
        %v970 = vpack.i.b16 %v969, %v968
        %v973 = vpack.i.b16 %v962, %v903
        %v974 = vshrl.u32 %v903, 16
        %v975 = vshrl.u32 %v962, 16
        %v976 = vpack.i.b16 %v975, %v974
        %v979 = vpack.i.b16 %v953, %v894
        %v980 = vshrl.u32 %v894, 16
        %v981 = vshrl.u32 %v953, 16
        %v982 = vpack.i.b16 %v981, %v980
        %v985 = vpack.i.b16 %v963, %v904
        %v986 = vshrl.u32 %v904, 16
        %v987 = vshrl.u32 %v963, 16
        %v988 = vpack.i.b16 %v987, %v986
        %v991 = vpack.i.b16 %v961, %v902
        %v992 = vshrl.u32 %v902, 16
        %v993 = vshrl.u32 %v961, 16
        %v994 = vpack.i.b16 %v993, %v992
        %v997 = vpack.i.b16 %v964, %v905
        %v998 = vshrl.u32 %v905, 16
        %v999 = vshrl.u32 %v964, 16
        %v1000 = vpack.i.b16 %v999, %v998
        %vm1001 = vcmask 64512
        %v1003 = vsel %vm1001, %v967, 0
        %v1006 = vsel %vm1001, %v979, 0
        %1008 = vmatprep.subr.bf16.mxu0 0
        %1009 = vmatpush1.bf16.xpose.msra.mxu0 %v1006
        %1010 = vmatprep.subr.bf16.mxu0 0
        %1011 = vmatpush1.bf16.xpose.msra.mxu0 0
        %1012 = vmatprep.subr.bf16.mxu0 0
        %1013 = vmatpush1.bf16.xpose.msra.mxu0 0
        %1014 = vmatprep.subr.bf16.mxu0 0
        %1015 = vmatpush1.bf16.xpose.msra.mxu0 0
        %1016 = vmatprep.subr.bf16.mxu0 0
        %1017 = vmatpush1.bf16.xpose.msra.mxu0 0
        %1018 = vmatprep.subr.bf16.mxu0 0
        %1019 = vmatpush1.bf16.xpose.msra.mxu0 0
        %1020 = vmatprep.subr.bf16.mxu0 0
        %1021 = vmatpush1.bf16.xpose.msra.mxu0 0
        %1022 = vmatprep.subr.bf16.mxu0 0
        %1023 = vmatpush1.bf16.xpose.msra.mxu0 0
        %1024 = vmatprep.subr.bf16.mxu0 0
        %1025 = vmatpush1.bf16.xpose.msra.mxu0 0
        %1026 = vmatprep.subr.bf16.mxu0 0
        %1027 = vmatpush1.bf16.xpose.msra.mxu0 0
        %1028 = vmatprep.subr.bf16.mxu0 0
        %1029 = vmatpush1.bf16.xpose.msra.mxu0 0
        %1030 = vmatprep.subr.bf16.mxu0 0
        %1031 = vmatpush1.bf16.xpose.msra.mxu0 0
        %1032 = vmatprep.subr.bf16.mxu0 0
        %1033 = vmatpush1.bf16.xpose.msra.mxu0 0
        %1034 = vmatprep.subr.bf16.mxu0 0
        %1035 = vmatpush1.bf16.xpose.msra.mxu0 0
        %1036 = vmatprep.subr.bf16.mxu0 0
        %1037 = vmatpush1.bf16.xpose.msra.mxu0 0
        %1038 = vmatprep.subr.bf16.mxu0 0
        %1039 = vmatpush1.bf16.xpose.msra.mxu0 0
        %1040 = vmatprep.mubr.bf16.mxu0 0
        %1041 = vmatmul.mubr.bf16.gmra.mrb[0].mxu0 %v1003
        %v1042 = vpop.f32.mrb[0].mxu0
        %v1043 = vadd.f32 %v549, %v1042
        %v1044 = vpop.f32.mrb[0].mxu0
        %v1045 = vpop.f32.mrb[0].mxu0
        %v1046 = vpop.f32.mrb[0].mxu0
        %1047 = vdwg.mxu0
        %v1049 = vsel %vm1001, %v970, 0
        %v1052 = vsel %vm1001, %v982, 0
        %1054 = vmatprep.subr.bf16.mxu0 0
        %1055 = vmatpush1.bf16.xpose.msra.mxu0 %v1052
        %1056 = vmatprep.subr.bf16.mxu0 0
        %1057 = vmatpush1.bf16.xpose.msra.mxu0 0
        %1058 = vmatprep.subr.bf16.mxu0 0
        %1059 = vmatpush1.bf16.xpose.msra.mxu0 0
        %1060 = vmatprep.subr.bf16.mxu0 0
        %1061 = vmatpush1.bf16.xpose.msra.mxu0 0
        %1062 = vmatprep.subr.bf16.mxu0 0
        %1063 = vmatpush1.bf16.xpose.msra.mxu0 0
        %1064 = vmatprep.subr.bf16.mxu0 0
        %1065 = vmatpush1.bf16.xpose.msra.mxu0 0
        %1066 = vmatprep.subr.bf16.mxu0 0
        %1067 = vmatpush1.bf16.xpose.msra.mxu0 0
        %1068 = vmatprep.subr.bf16.mxu0 0
        %1069 = vmatpush1.bf16.xpose.msra.mxu0 0
        %1070 = vmatprep.subr.bf16.mxu0 0
        %1071 = vmatpush1.bf16.xpose.msra.mxu0 0
        %1072 = vmatprep.subr.bf16.mxu0 0
        %1073 = vmatpush1.bf16.xpose.msra.mxu0 0
        %1074 = vmatprep.subr.bf16.mxu0 0
        %1075 = vmatpush1.bf16.xpose.msra.mxu0 0
        %1076 = vmatprep.subr.bf16.mxu0 0
        %1077 = vmatpush1.bf16.xpose.msra.mxu0 0
        %1078 = vmatprep.subr.bf16.mxu0 0
        %1079 = vmatpush1.bf16.xpose.msra.mxu0 0
        %1080 = vmatprep.subr.bf16.mxu0 0
        %1081 = vmatpush1.bf16.xpose.msra.mxu0 0
        %1082 = vmatprep.subr.bf16.mxu0 0
        %1083 = vmatpush1.bf16.xpose.msra.mxu0 0
        %1084 = vmatprep.subr.bf16.mxu0 0
        %1085 = vmatpush1.bf16.xpose.msra.mxu0 0
        %1086 = vmatprep.mubr.bf16.mxu0 0
        %1087 = vmatmul.mubr.bf16.gmra.mrb[0].mxu0 %v1049
        %v1088 = vpop.f32.mrb[0].mxu0
        %v1089 = vadd.f32 %v549, %v1088
        %v1090 = vpop.f32.mrb[0].mxu0
        %v1091 = vpop.f32.mrb[0].mxu0
        %v1092 = vpop.f32.mrb[0].mxu0
        %1093 = vdwg.mxu0
        %v1095 = vsel %vm1001, %v973, 0
        %v1098 = vsel %vm1001, %v985, 0
        %1100 = vmatprep.subr.bf16.mxu0 0
        %1101 = vmatpush1.bf16.xpose.msra.mxu0 %v1098
        %1102 = vmatprep.subr.bf16.mxu0 0
        %1103 = vmatpush1.bf16.xpose.msra.mxu0 0
        %1104 = vmatprep.subr.bf16.mxu0 0
        %1105 = vmatpush1.bf16.xpose.msra.mxu0 0
        %1106 = vmatprep.subr.bf16.mxu0 0
        %1107 = vmatpush1.bf16.xpose.msra.mxu0 0
        %1108 = vmatprep.subr.bf16.mxu0 0
        %1109 = vmatpush1.bf16.xpose.msra.mxu0 0
        %1110 = vmatprep.subr.bf16.mxu0 0
        %1111 = vmatpush1.bf16.xpose.msra.mxu0 0
        %1112 = vmatprep.subr.bf16.mxu0 0
        %1113 = vmatpush1.bf16.xpose.msra.mxu0 0
        %1114 = vmatprep.subr.bf16.mxu0 0
        %1115 = vmatpush1.bf16.xpose.msra.mxu0 0
        %1116 = vmatprep.subr.bf16.mxu0 0
        %1117 = vmatpush1.bf16.xpose.msra.mxu0 0
        %1118 = vmatprep.subr.bf16.mxu0 0
        %1119 = vmatpush1.bf16.xpose.msra.mxu0 0
        %1120 = vmatprep.subr.bf16.mxu0 0
        %1121 = vmatpush1.bf16.xpose.msra.mxu0 0
        %1122 = vmatprep.subr.bf16.mxu0 0
        %1123 = vmatpush1.bf16.xpose.msra.mxu0 0
        %1124 = vmatprep.subr.bf16.mxu0 0
        %1125 = vmatpush1.bf16.xpose.msra.mxu0 0
        %1126 = vmatprep.subr.bf16.mxu0 0
        %1127 = vmatpush1.bf16.xpose.msra.mxu0 0
        %1128 = vmatprep.subr.bf16.mxu0 0
        %1129 = vmatpush1.bf16.xpose.msra.mxu0 0
        %1130 = vmatprep.subr.bf16.mxu0 0
        %1131 = vmatpush1.bf16.xpose.msra.mxu0 0
        %1132 = vmatprep.mubr.bf16.mxu0 0
        %1133 = vmatmul.mubr.bf16.gmra.mrb[0].mxu0 %v1095
        %v1134 = vpop.f32.mrb[0].mxu0
        %v1135 = vadd.f32 %v549, %v1134
        %v1136 = vpop.f32.mrb[0].mxu0
        %v1137 = vpop.f32.mrb[0].mxu0
        %v1138 = vpop.f32.mrb[0].mxu0
        %1139 = vdwg.mxu0
        %v1141 = vsel %vm1001, %v976, 0
        %v1144 = vsel %vm1001, %v988, 0
        %1146 = vmatprep.subr.bf16.mxu0 0
        %1147 = vmatpush1.bf16.xpose.msra.mxu0 %v1144
        %1148 = vmatprep.subr.bf16.mxu0 0
        %1149 = vmatpush1.bf16.xpose.msra.mxu0 0
        %1150 = vmatprep.subr.bf16.mxu0 0
        %1151 = vmatpush1.bf16.xpose.msra.mxu0 0
        %1152 = vmatprep.subr.bf16.mxu0 0
        %1153 = vmatpush1.bf16.xpose.msra.mxu0 0
        %1154 = vmatprep.subr.bf16.mxu0 0
        %1155 = vmatpush1.bf16.xpose.msra.mxu0 0
        %1156 = vmatprep.subr.bf16.mxu0 0
        %1157 = vmatpush1.bf16.xpose.msra.mxu0 0
        %1158 = vmatprep.subr.bf16.mxu0 0
        %1159 = vmatpush1.bf16.xpose.msra.mxu0 0
        %1160 = vmatprep.subr.bf16.mxu0 0
        %1161 = vmatpush1.bf16.xpose.msra.mxu0 0
        %1162 = vmatprep.subr.bf16.mxu0 0
        %1163 = vmatpush1.bf16.xpose.msra.mxu0 0
        %1164 = vmatprep.subr.bf16.mxu0 0
        %1165 = vmatpush1.bf16.xpose.msra.mxu0 0
        %1166 = vmatprep.subr.bf16.mxu0 0
        %1167 = vmatpush1.bf16.xpose.msra.mxu0 0
        %1168 = vmatprep.subr.bf16.mxu0 0
        %1169 = vmatpush1.bf16.xpose.msra.mxu0 0
        %1170 = vmatprep.subr.bf16.mxu0 0
        %1171 = vmatpush1.bf16.xpose.msra.mxu0 0
        %1172 = vmatprep.subr.bf16.mxu0 0
        %1173 = vmatpush1.bf16.xpose.msra.mxu0 0
        %1174 = vmatprep.subr.bf16.mxu0 0
        %1175 = vmatpush1.bf16.xpose.msra.mxu0 0
        %1176 = vmatprep.subr.bf16.mxu0 0
        %1177 = vmatpush1.bf16.xpose.msra.mxu0 0
        %1178 = vmatprep.mubr.bf16.mxu0 0
        %1179 = vmatmul.mubr.bf16.gmra.mrb[0].mxu0 %v1141
        %v1180 = vpop.f32.mrb[0].mxu0
        %v1181 = vadd.f32 %v549, %v1180
        %v1182 = vpop.f32.mrb[0].mxu0
        %v1183 = vpop.f32.mrb[0].mxu0
        %v1184 = vpop.f32.mrb[0].mxu0
        %1185 = vdwg.mxu0
        %v1186 = vsel %vm1001, %v1043, -inf
        %1187 = vmax.xlane.f32.xlu0 %v1186
        %v1188 = vpop.xlane.xlu0 %1187
        %v1189 = vsel %vm1001, %v1089, -inf
        %1190 = vmax.xlane.f32.xlu0 %v1189
        %v1191 = vpop.xlane.xlu0 %1190
        %v1192 = vsel %vm1001, %v1135, -inf
        %1193 = vmax.xlane.f32.xlu0 %v1192
        %v1194 = vpop.xlane.xlu0 %1193
        %v1195 = vsel %vm1001, %v1181, -inf
        %1196 = vmax.xlane.f32.xlu0 %v1195
        %v1197 = vpop.xlane.xlu0 %1196
        %v1198 = vsub.f32 %v1043, %v1188
        %v1199 = vsub.f32 %v1089, %v1191
        %v1200 = vsub.f32 %v1135, %v1194
        %v1201 = vsub.f32 %v1181, %v1197
        %v1202 = vmul.f32 %v1198, 1.442695
        %v1203 = vpow.pop %v1202
        %v1204 = vmul.f32 %v1199, 1.442695
        %v1205 = vpow.pop %v1204
        %v1206 = vmul.f32 %v1200, 1.442695
        %v1207 = vpow.pop %v1206
        %v1208 = vmul.f32 %v1201, 1.442695
        %v1209 = vpow.pop %v1208
        %v1210 = vsel %vm1001, %v1203, 0.0
        %1211 = vadd.xlane.f32.xlu0 %v1210
        %v1212 = vpop.xlane.xlu0 %1211
        %v1213 = vsel %vm1001, %v1205, 0.0
        %1214 = vadd.xlane.f32.xlu0 %v1213
        %v1215 = vpop.xlane.xlu0 %1214
        %v1216 = vsel %vm1001, %v1207, 0.0
        %1217 = vadd.xlane.f32.xlu0 %v1216
        %v1218 = vpop.xlane.xlu0 %1217
        %v1219 = vsel %vm1001, %v1209, 0.0
        %1220 = vadd.xlane.f32.xlu0 %v1219
        %v1221 = vpop.xlane.xlu0 %1220
        %v1222 = vpack.c.bf16 %v1203, %v1203
        %v1223 = vpack.c.bf16 %v1205, %v1205
        %v1224 = vpack.c.bf16 %v1207, %v1207
        %v1225 = vpack.c.bf16 %v1209, %v1209
        %v1227 = vsel %vm1001, %v1222, 0
        %vm1229 = vcmask 1043456
        %v1231 = vsel %vm1229, %v991, 0
        %1233 = vmatprep.subr.bf16.mxu0 0
        %1234 = vmatpush1.bf16.msra.mxu0 %v1231
        %1235 = vmatprep.subr.bf16.mxu0 0
        %1236 = vmatpush1.bf16.msra.mxu0 0
        %1237 = vmatprep.subr.bf16.mxu0 0
        %1238 = vmatpush1.bf16.msra.mxu0 0
        %1239 = vmatprep.subr.bf16.mxu0 0
        %1240 = vmatpush1.bf16.msra.mxu0 0
        %1241 = vmatprep.subr.bf16.mxu0 0
        %1242 = vmatpush1.bf16.msra.mxu0 0
        %1243 = vmatprep.subr.bf16.mxu0 0
        %1244 = vmatpush1.bf16.msra.mxu0 0
        %1245 = vmatprep.subr.bf16.mxu0 0
        %1246 = vmatpush1.bf16.msra.mxu0 0
        %1247 = vmatprep.subr.bf16.mxu0 0
        %1248 = vmatpush1.bf16.msra.mxu0 0
        %1249 = vmatprep.subr.bf16.mxu0 0
        %1250 = vmatpush1.bf16.msra.mxu0 0
        %1251 = vmatprep.subr.bf16.mxu0 0
        %1252 = vmatpush1.bf16.msra.mxu0 0
        %1253 = vmatprep.subr.bf16.mxu0 0
        %1254 = vmatpush1.bf16.msra.mxu0 0
        %1255 = vmatprep.subr.bf16.mxu0 0
        %1256 = vmatpush1.bf16.msra.mxu0 0
        %1257 = vmatprep.subr.bf16.mxu0 0
        %1258 = vmatpush1.bf16.msra.mxu0 0
        %1259 = vmatprep.subr.bf16.mxu0 0
        %1260 = vmatpush1.bf16.msra.mxu0 0
        %1261 = vmatprep.subr.bf16.mxu0 0
        %1262 = vmatpush1.bf16.msra.mxu0 0
        %1263 = vmatprep.subr.bf16.mxu0 0
        %1264 = vmatpush1.bf16.msra.mxu0 0
        %1265 = vmatprep.mubr.bf16.mxu0 0
        %1266 = vmatmul.mubr.bf16.gmra.mrb[0].mxu0 %v1227
        %v1267 = vpop.f32.mrb[0].mxu0
        %v1268 = vadd.f32 0.0, %v1267
        %v1269 = vpop.f32.mrb[0].mxu0
        %v1270 = vpop.f32.mrb[0].mxu0
        %v1271 = vpop.f32.mrb[0].mxu0
        %1272 = vdwg.mxu0
        %v1274 = vsel %vm1001, %v1223, 0
        %v1277 = vsel %vm1229, %v994, 0
        %1279 = vmatprep.subr.bf16.mxu0 0
        %1280 = vmatpush1.bf16.msra.mxu0 %v1277
        %1281 = vmatprep.subr.bf16.mxu0 0
        %1282 = vmatpush1.bf16.msra.mxu0 0
        %1283 = vmatprep.subr.bf16.mxu0 0
        %1284 = vmatpush1.bf16.msra.mxu0 0
        %1285 = vmatprep.subr.bf16.mxu0 0
        %1286 = vmatpush1.bf16.msra.mxu0 0
        %1287 = vmatprep.subr.bf16.mxu0 0
        %1288 = vmatpush1.bf16.msra.mxu0 0
        %1289 = vmatprep.subr.bf16.mxu0 0
        %1290 = vmatpush1.bf16.msra.mxu0 0
        %1291 = vmatprep.subr.bf16.mxu0 0
        %1292 = vmatpush1.bf16.msra.mxu0 0
        %1293 = vmatprep.subr.bf16.mxu0 0
        %1294 = vmatpush1.bf16.msra.mxu0 0
        %1295 = vmatprep.subr.bf16.mxu0 0
        %1296 = vmatpush1.bf16.msra.mxu0 0
        %1297 = vmatprep.subr.bf16.mxu0 0
        %1298 = vmatpush1.bf16.msra.mxu0 0
        %1299 = vmatprep.subr.bf16.mxu0 0
        %1300 = vmatpush1.bf16.msra.mxu0 0
        %1301 = vmatprep.subr.bf16.mxu0 0
        %1302 = vmatpush1.bf16.msra.mxu0 0
        %1303 = vmatprep.subr.bf16.mxu0 0
        %1304 = vmatpush1.bf16.msra.mxu0 0
        %1305 = vmatprep.subr.bf16.mxu0 0
        %1306 = vmatpush1.bf16.msra.mxu0 0
        %1307 = vmatprep.subr.bf16.mxu0 0
        %1308 = vmatpush1.bf16.msra.mxu0 0
        %1309 = vmatprep.subr.bf16.mxu0 0
        %1310 = vmatpush1.bf16.msra.mxu0 0
        %1311 = vmatprep.mubr.bf16.mxu0 0
        %1312 = vmatmul.mubr.bf16.gmra.mrb[0].mxu0 %v1274
        %v1313 = vpop.f32.mrb[0].mxu0
        %v1314 = vadd.f32 0.0, %v1313
        %v1315 = vpop.f32.mrb[0].mxu0
        %v1316 = vpop.f32.mrb[0].mxu0
        %v1317 = vpop.f32.mrb[0].mxu0
        %1318 = vdwg.mxu0
        %v1320 = vsel %vm1001, %v1224, 0
        %v1323 = vsel %vm1229, %v997, 0
        %1325 = vmatprep.subr.bf16.mxu0 0
        %1326 = vmatpush1.bf16.msra.mxu0 %v1323
        %1327 = vmatprep.subr.bf16.mxu0 0
        %1328 = vmatpush1.bf16.msra.mxu0 0
        %1329 = vmatprep.subr.bf16.mxu0 0
        %1330 = vmatpush1.bf16.msra.mxu0 0
        %1331 = vmatprep.subr.bf16.mxu0 0
        %1332 = vmatpush1.bf16.msra.mxu0 0
        %1333 = vmatprep.subr.bf16.mxu0 0
        %1334 = vmatpush1.bf16.msra.mxu0 0
        %1335 = vmatprep.subr.bf16.mxu0 0
        %1336 = vmatpush1.bf16.msra.mxu0 0
        %1337 = vmatprep.subr.bf16.mxu0 0
        %1338 = vmatpush1.bf16.msra.mxu0 0
        %1339 = vmatprep.subr.bf16.mxu0 0
        %1340 = vmatpush1.bf16.msra.mxu0 0
        %1341 = vmatprep.subr.bf16.mxu0 0
        %1342 = vmatpush1.bf16.msra.mxu0 0
        %1343 = vmatprep.subr.bf16.mxu0 0
        %1344 = vmatpush1.bf16.msra.mxu0 0
        %1345 = vmatprep.subr.bf16.mxu0 0
        %1346 = vmatpush1.bf16.msra.mxu0 0
        %1347 = vmatprep.subr.bf16.mxu0 0
        %1348 = vmatpush1.bf16.msra.mxu0 0
        %1349 = vmatprep.subr.bf16.mxu0 0
        %1350 = vmatpush1.bf16.msra.mxu0 0
        %1351 = vmatprep.subr.bf16.mxu0 0
        %1352 = vmatpush1.bf16.msra.mxu0 0
        %1353 = vmatprep.subr.bf16.mxu0 0
        %1354 = vmatpush1.bf16.msra.mxu0 0
        %1355 = vmatprep.subr.bf16.mxu0 0
        %1356 = vmatpush1.bf16.msra.mxu0 0
        %1357 = vmatprep.mubr.bf16.mxu0 0
        %1358 = vmatmul.mubr.bf16.gmra.mrb[0].mxu0 %v1320
        %v1359 = vpop.f32.mrb[0].mxu0
        %v1360 = vadd.f32 0.0, %v1359
        %v1361 = vpop.f32.mrb[0].mxu0
        %v1362 = vpop.f32.mrb[0].mxu0
        %v1363 = vpop.f32.mrb[0].mxu0
        %1364 = vdwg.mxu0
        %v1366 = vsel %vm1001, %v1225, 0
        %v1369 = vsel %vm1229, %v1000, 0
        %1371 = vmatprep.subr.bf16.mxu0 0
        %1372 = vmatpush1.bf16.msra.mxu0 %v1369
        %1373 = vmatprep.subr.bf16.mxu0 0
        %1374 = vmatpush1.bf16.msra.mxu0 0
        %1375 = vmatprep.subr.bf16.mxu0 0
        %1376 = vmatpush1.bf16.msra.mxu0 0
        %1377 = vmatprep.subr.bf16.mxu0 0
        %1378 = vmatpush1.bf16.msra.mxu0 0
        %1379 = vmatprep.subr.bf16.mxu0 0
        %1380 = vmatpush1.bf16.msra.mxu0 0
        %1381 = vmatprep.subr.bf16.mxu0 0
        %1382 = vmatpush1.bf16.msra.mxu0 0
        %1383 = vmatprep.subr.bf16.mxu0 0
        %1384 = vmatpush1.bf16.msra.mxu0 0
        %1385 = vmatprep.subr.bf16.mxu0 0
        %1386 = vmatpush1.bf16.msra.mxu0 0
        %1387 = vmatprep.subr.bf16.mxu0 0
        %1388 = vmatpush1.bf16.msra.mxu0 0
        %1389 = vmatprep.subr.bf16.mxu0 0
        %1390 = vmatpush1.bf16.msra.mxu0 0
        %1391 = vmatprep.subr.bf16.mxu0 0
        %1392 = vmatpush1.bf16.msra.mxu0 0
        %1393 = vmatprep.subr.bf16.mxu0 0
        %1394 = vmatpush1.bf16.msra.mxu0 0
        %1395 = vmatprep.subr.bf16.mxu0 0
        %1396 = vmatpush1.bf16.msra.mxu0 0
        %1397 = vmatprep.subr.bf16.mxu0 0
        %1398 = vmatpush1.bf16.msra.mxu0 0
        %1399 = vmatprep.subr.bf16.mxu0 0
        %1400 = vmatpush1.bf16.msra.mxu0 0
        %1401 = vmatprep.subr.bf16.mxu0 0
        %1402 = vmatpush1.bf16.msra.mxu0 0
        %1403 = vmatprep.mubr.bf16.mxu0 0
        %1404 = vmatmul.mubr.bf16.gmra.mrb[0].mxu0 %v1366
        %v1405 = vpop.f32.mrb[0].mxu0
        %v1406 = vadd.f32 0.0, %v1405
        %v1407 = vpop.f32.mrb[0].mxu0
        %v1408 = vpop.f32.mrb[0].mxu0
        %v1409 = vpop.f32.mrb[0].mxu0
        %1410 = vdwg.mxu0
        %v1411 = vrcp.pop %v1212
        %v1412 = vrcp.pop %v1215
        %v1413 = vrcp.pop %v1218
        %v1414 = vrcp.pop %v1221
        %v1415 = vmul.f32 %v1268, %v1411
        %v1416 = vmul.f32 %v1314, %v1412
        %v1417 = vmul.f32 %v1360, %v1413
        %v1418 = vmul.f32 %v1406, %v1414
        %v1419 = vpack.c.bf16 %v1415, %v1415
        %v1421 = vunpack.c.l.s4 1983009808
        %v1422 = vunpack.c.0.s8 %v1421
        %v1423 = vlaneseq
        %v1424 = vshrl.u32 %v1423, 7
        %v1425 = vsub.s32 %v1422, %v1424
        %v1426 = vrot.slane %v1419, %v1425
        %v1427 = vpack.c.bf16 %v1417, %v1417
        %v1429 = vunpack.c.l.s4 1983009808
        %v1430 = vunpack.c.0.s8 %v1429
        %v1431 = vlaneseq
        %v1432 = vshrl.u32 %v1431, 7
        %v1433 = vsub.s32 %v1430, %v1432
        %v1434 = vrot.slane %v1427, %v1433
        %v1435 = vcombine.low %v1426, %v1434
        %v1436 = vcombine.high %v1426, %v1434
        %v1438 = vunpack.c.l.s4 1934713408
        %v1439 = vunpack.c.0.s8 %v1438
        %v1440 = vlaneseq
        %v1441 = vshrl.u32 %v1440, 7
        %v1442 = vsub.s32 %v1439, %v1441
        %v1443 = vrot.slane %v1435, %v1442
        %v1445 = vunpack.c.l.s4 1934713408
        %v1446 = vunpack.c.0.s8 %v1445
        %v1447 = vlaneseq
        %v1448 = vshrl.u32 %v1447, 7
        %v1449 = vsub.s32 %v1446, %v1448
        %v1450 = vrot.slane %v1436, %v1449
        %v1451 = vcombine.high %v1443, 0
        %v1452 = vcombine.high %v1450, 0
        %v1453 = vpack.c.bf16 %v1416, %v1416
        %v1455 = vunpack.c.l.s4 1983009808
        %v1456 = vunpack.c.0.s8 %v1455
        %v1457 = vlaneseq
        %v1458 = vshrl.u32 %v1457, 7
        %v1459 = vsub.s32 %v1456, %v1458
        %v1460 = vrot.slane %v1453, %v1459
        %v1461 = vpack.c.bf16 %v1418, %v1418
        %v1463 = vunpack.c.l.s4 1983009808
        %v1464 = vunpack.c.0.s8 %v1463
        %v1465 = vlaneseq
        %v1466 = vshrl.u32 %v1465, 7
        %v1467 = vsub.s32 %v1464, %v1466
        %v1468 = vrot.slane %v1461, %v1467
        %v1469 = vcombine.low %v1460, %v1468
        %v1470 = vcombine.high %v1460, %v1468
        %v1472 = vunpack.c.l.s4 1934713408
        %v1473 = vunpack.c.0.s8 %v1472
        %v1474 = vlaneseq
        %v1475 = vshrl.u32 %v1474, 7
        %v1476 = vsub.s32 %v1473, %v1475
        %v1477 = vrot.slane %v1469, %v1476
        %v1479 = vunpack.c.l.s4 1934713408
        %v1480 = vunpack.c.0.s8 %v1479
        %v1481 = vlaneseq
        %v1482 = vshrl.u32 %v1481, 7
        %v1483 = vsub.s32 %v1480, %v1482
        %v1484 = vrot.slane %v1470, %v1483
        %v1485 = vcombine.high %v1477, 0
        %v1486 = vcombine.high %v1484, 0
        %v1489 = vpack.i.b16 %v1477, %v1443
        %v1491 = vshrl.u32 %v1443, 16
        %v1492 = vshrl.u32 %v1477, 16
        %v1493 = vpack.i.b16 %v1492, %v1491
        %v1497 = vpack.i.b16 %v1485, %v1451
        %v1499 = vshrl.u32 %v1451, 16
        %v1500 = vshrl.u32 %v1485, 16
        %v1501 = vpack.i.b16 %v1500, %v1499
        %v1505 = vpack.i.b16 %v1484, %v1450
        %v1507 = vshrl.u32 %v1450, 16
        %v1508 = vshrl.u32 %v1484, 16
        %v1509 = vpack.i.b16 %v1508, %v1507
        %v1513 = vpack.i.b16 %v1486, %v1452
        %v1515 = vshrl.u32 %v1452, 16
        %v1516 = vshrl.u32 %v1486, 16
        %v1517 = vpack.i.b16 %v1516, %v1515
        %v1519 = vcombine.low %v1489, %v1505
        %v1521 = vunpack.c.l.s4 1983009808
        %v1522 = vunpack.c.0.s8 %v1521
        %v1523 = vlaneseq
        %v1524 = vshrl.u32 %v1523, 7
        %v1525 = vsub.s32 %v1522, %v1524
        %v1526 = vrot.slane %v1519, %v1525
        %v1527 = vcombine.low %v1497, %v1513
        %v1529 = vunpack.c.l.s4 1983009808
        %v1530 = vunpack.c.0.s8 %v1529
        %v1531 = vlaneseq
        %v1532 = vshrl.u32 %v1531, 7
        %v1533 = vsub.s32 %v1530, %v1532
        %v1534 = vrot.slane %v1527, %v1533
        %v1535 = vcombine.low %v1526, %v1534
        %v1537 = vunpack.c.l.s4 1934713408
        %v1538 = vunpack.c.0.s8 %v1537
        %v1539 = vlaneseq
        %v1540 = vshrl.u32 %v1539, 7
        %v1541 = vsub.s32 %v1538, %v1540
        %v1542 = vrot.slane %v1535, %v1541
        %v1543 = vcombine.high %v1542, 0
        %v1544 = vcombine.low %v1493, %v1509
        %v1546 = vunpack.c.l.s4 1983009808
        %v1547 = vunpack.c.0.s8 %v1546
        %v1548 = vlaneseq
        %v1549 = vshrl.u32 %v1548, 7
        %v1550 = vsub.s32 %v1547, %v1549
        %v1551 = vrot.slane %v1544, %v1550
        %v1552 = vcombine.low %v1501, %v1517
        %v1554 = vunpack.c.l.s4 1983009808
        %v1555 = vunpack.c.0.s8 %v1554
        %v1556 = vlaneseq
        %v1557 = vshrl.u32 %v1556, 7
        %v1558 = vsub.s32 %v1555, %v1557
        %v1559 = vrot.slane %v1552, %v1558
        %v1560 = vcombine.low %v1551, %v1559
        %v1562 = vunpack.c.l.s4 1934713408
        %v1563 = vunpack.c.0.s8 %v1562
        %v1564 = vlaneseq
        %v1565 = vshrl.u32 %v1564, 7
        %v1566 = vsub.s32 %v1563, %v1565
        %v1567 = vrot.slane %v1560, %v1566
        %v1568 = vcombine.high %v1567, 0
        %v1571 = vpack.i.b16 %v1567, %v1542
        %v1572 = vshrl.u32 %v1542, 16
        %v1573 = vshrl.u32 %v1567, 16
        %v1574 = vpack.i.b16 %v1573, %v1572
        %v1577 = vpack.i.b16 %v1568, %v1543
        %v1578 = vshrl.u32 %v1543, 16
        %v1579 = vshrl.u32 %v1568, 16
        %v1580 = vpack.i.b16 %v1579, %v1578
        %1581 = vrot.lane.b32.xlu0 %v1574, 8
        %v1582 = vpop.permute.xlu0 %1581
        %1583 = vrot.lane.b32.xlu0 %v1577, 16
        %v1584 = vpop.permute.xlu0 %1583
        %1585 = vrot.lane.b32.xlu0 %v1580, 24
        %v1586 = vpop.permute.xlu0 %1585
        %v1589 = vsel %vm1001, %v1571, %v1582
        %vm1590 = vcmask 130048
        %v1592 = vsel %vm1590, %v1589, %v1584
        %vm1593 = vcmask 195584
        %v1595 = vsel %vm1593, %v1592, %v1586
        %v1596 = vld [vmem:[#allocation5] sm:$0xf]
        %v1597 = vld [vmem:[#allocation5 + $0x4] sm:$0xf]
        %v1598 = vld [vmem:[#allocation5 + $0x8] sm:$0xf]
        %v1599 = vld [vmem:[#allocation5 + $0xc] sm:$0xf]
        %v1600 = vld [vmem:[#allocation7] sm:$0x1]
        %v1602 = vlaneseq
        %v1603 = vshrl.u32 %v1602, 7
        %v1604 = vsub.s32 0, %v1603
        %v1605 = vrot.slane %v1600, %v1604
        %v1611 = vunpack.c.l.b16 %v1596
        %v1612 = vunpack.c.l.b16 %v1597
        %v1613 = vunpack.c.l.b16 %v1598
        %v1614 = vunpack.c.l.b16 %v1599
        %v1615 = vpack.c.b16 %v1612, %v1611
        %v1616 = vpack.c.b16 %v1614, %v1613
        %v1619 = vsel %vm552, %v1595, 0
        %1621 = vmatprep.subr.bf16.mxu0 0
        %1622 = vmatpush1.bf16.msra.mxu0 %v1615
        %1623 = vmatprep.subr.bf16.mxu0 0
        %1624 = vmatpush1.bf16.msra.mxu0 %v1616
        %1625 = vmatprep.subr.bf16.mxu0 0
        %1626 = vmatpush1.bf16.msra.mxu0 0
        %1627 = vmatprep.subr.bf16.mxu0 0
        %1628 = vmatpush1.bf16.msra.mxu0 0
        %1629 = vmatprep.subr.bf16.mxu0 0
        %1630 = vmatpush1.bf16.msra.mxu0 0
        %1631 = vmatprep.subr.bf16.mxu0 0
        %1632 = vmatpush1.bf16.msra.mxu0 0
        %1633 = vmatprep.subr.bf16.mxu0 0
        %1634 = vmatpush1.bf16.msra.mxu0 0
        %1635 = vmatprep.subr.bf16.mxu0 0
        %1636 = vmatpush1.bf16.msra.mxu0 0
        %1637 = vmatprep.subr.bf16.mxu0 0
        %1638 = vmatpush1.bf16.msra.mxu0 0
        %1639 = vmatprep.subr.bf16.mxu0 0
        %1640 = vmatpush1.bf16.msra.mxu0 0
        %1641 = vmatprep.subr.bf16.mxu0 0
        %1642 = vmatpush1.bf16.msra.mxu0 0
        %1643 = vmatprep.subr.bf16.mxu0 0
        %1644 = vmatpush1.bf16.msra.mxu0 0
        %1645 = vmatprep.subr.bf16.mxu0 0
        %1646 = vmatpush1.bf16.msra.mxu0 0
        %1647 = vmatprep.subr.bf16.mxu0 0
        %1648 = vmatpush1.bf16.msra.mxu0 0
        %1649 = vmatprep.subr.bf16.mxu0 0
        %1650 = vmatpush1.bf16.msra.mxu0 0
        %1651 = vmatprep.subr.bf16.mxu0 0
        %1652 = vmatpush1.bf16.msra.mxu0 0
        %1653 = vmatprep.mubr.bf16.mxu0 0
        %1654 = vmatmul.mubr.bf16.gmra.mrb[0].mxu0 %v1619
        %v1655 = vpop.f32.mrb[0].mxu0
        %v1656 = vadd.f32 %v1605, %v1655
        %v1657 = vpop.f32.mrb[0].mxu0
        %v1658 = vpop.f32.mrb[0].mxu0
        %v1659 = vpop.f32.mrb[0].mxu0
        %1660 = vdwg.mxu0
        %v1661 = vadd.f32 %v1656, %v546
        %v1662 = vld [vmem:[#allocation8] sm:$0x1]
        %v1663 = vld [vmem:[#allocation10] sm:$0x1]
        %v1664 = vsel %vm552, %v1661, 0.0
        %1665 = vadd.xlane.f32.xlu0 %v1664
        %v1666 = vpop.xlane.xlu0 %1665
        %v1667 = vmul.f32 %v1666, %v556
        %v1668 = vsub.f32 %v1661, %v1667
        %v1669 = vmul.f32 %v1668, %v1668
        %v1670 = vsel %vm552, %v1669, 0.0
        %1671 = vadd.xlane.f32.xlu0 %v1670
        %v1672 = vpop.xlane.xlu0 %1671
        %v1673 = vmul.f32 %v1672, %v556
        %v1674 = vadd.f32 %v1673, 1e-06
        %v1675 = vrsqrt.pop %v1674
        %v1676 = vmul.f32 %v1668, %v1675
        %v1678 = vlaneseq
        %v1679 = vshrl.u32 %v1678, 7
        %v1680 = vsub.s32 0, %v1679
        %v1681 = vrot.slane %v1662, %v1680
        %v1683 = vmul.f32 %v1676, %v1681
        %v1685 = vlaneseq
        %v1686 = vshrl.u32 %v1685, 7
        %v1687 = vsub.s32 0, %v1686
        %v1688 = vrot.slane %v1663, %v1687
        %v1690 = vadd.f32 %v1683, %v1688
        %v1691 = vpack.c.bf16 %v1690, %v1690
        %v1692 = vld [vmem:[%s10] sm:$0xf]
        %v1693 = vld [vmem:[%s10 + $0x4] sm:$0xf]
        %v1694 = vld [vmem:[%s10 + $0x8] sm:$0xf]
        %v1695 = vld [vmem:[%s10 + $0xc] sm:$0xf]
        %v1696 = vld [vmem:[%s11] sm:$0x1]
        %v1698 = vlaneseq
        %v1699 = vshrl.u32 %v1698, 7
        %v1700 = vsub.s32 0, %v1699
        %v1701 = vrot.slane %v1696, %v1700
        %v1707 = vunpack.c.l.b16 %v1692
        %v1708 = vunpack.c.l.b16 %v1693
        %v1709 = vunpack.c.l.b16 %v1694
        %v1710 = vunpack.c.l.b16 %v1695
        %v1711 = vpack.c.b16 %v1708, %v1707
        %v1712 = vpack.c.b16 %v1710, %v1709
        %v1716 = vsel %vm552, %v1691, 0
        %1718 = vmatprep.subr.bf16.mxu0 0
        %1719 = vmatpush1.bf16.msra.mxu0 %v1711
        %1720 = vmatprep.subr.bf16.mxu0 0
        %1721 = vmatpush1.bf16.msra.mxu0 %v1712
        %1722 = vmatprep.subr.bf16.mxu0 0
        %1723 = vmatpush1.bf16.msra.mxu0 0
        %1724 = vmatprep.subr.bf16.mxu0 0
        %1725 = vmatpush1.bf16.msra.mxu0 0
        %1726 = vmatprep.subr.bf16.mxu0 0
        %1727 = vmatpush1.bf16.msra.mxu0 0
        %1728 = vmatprep.subr.bf16.mxu0 0
        %1729 = vmatpush1.bf16.msra.mxu0 0
        %1730 = vmatprep.subr.bf16.mxu0 0
        %1731 = vmatpush1.bf16.msra.mxu0 0
        %1732 = vmatprep.subr.bf16.mxu0 0
        %1733 = vmatpush1.bf16.msra.mxu0 0
        %1734 = vmatprep.subr.bf16.mxu0 0
        %1735 = vmatpush1.bf16.msra.mxu0 0
        %1736 = vmatprep.subr.bf16.mxu0 0
        %1737 = vmatpush1.bf16.msra.mxu0 0
        %1738 = vmatprep.subr.bf16.mxu0 0
        %1739 = vmatpush1.bf16.msra.mxu0 0
        %1740 = vmatprep.subr.bf16.mxu0 0
        %1741 = vmatpush1.bf16.msra.mxu0 0
        %1742 = vmatprep.subr.bf16.mxu0 0
        %1743 = vmatpush1.bf16.msra.mxu0 0
        %1744 = vmatprep.subr.bf16.mxu0 0
        %1745 = vmatpush1.bf16.msra.mxu0 0
        %1746 = vmatprep.subr.bf16.mxu0 0
        %1747 = vmatpush1.bf16.msra.mxu0 0
        %1748 = vmatprep.subr.bf16.mxu0 0
        %1749 = vmatpush1.bf16.msra.mxu0 0
        %1750 = vmatprep.mubr.bf16.mxu0 0
        %1751 = vmatmul.mubr.bf16.gmra.mrb[0].mxu0 %v1716
        %v1752 = vpop.f32.mrb[0].mxu0
        %v1753 = vadd.f32 %v1701, %v1752
        %v1754 = vpop.f32.mrb[0].mxu0
        %v1755 = vpop.f32.mrb[0].mxu0
        %v1756 = vpop.f32.mrb[0].mxu0
        %1757 = vdwg.mxu0
        %v1758 = vmax.f32 %v1753, 0.0
        %v1759 = vpack.c.bf16 %v1758, %v1758
        %v1760 = vld [vmem:[%s12] sm:$0xf]
        %v1761 = vld [vmem:[%s12 + $0x4] sm:$0xf]
        %v1762 = vld [vmem:[%s12 + $0x8] sm:$0xf]
        %v1763 = vld [vmem:[%s12 + $0xc] sm:$0xf]
        %v1764 = vld [vmem:[%s12 + $0x10] sm:$0xf]
        %v1765 = vld [vmem:[%s12 + $0x14] sm:$0xf]
        %v1766 = vld [vmem:[%s12 + $0x18] sm:$0xf]
        %v1767 = vld [vmem:[%s12 + $0x1c] sm:$0xf]
        %v1768 = vld [vmem:[%s13] sm:$0x1]
        %v1770 = vlaneseq
        %v1771 = vshrl.u32 %v1770, 7
        %v1772 = vsub.s32 0, %v1771
        %v1773 = vrot.slane %v1768, %v1772
        %v1783 = vunpack.c.l.b16 %v1760
        %v1784 = vunpack.c.l.b16 %v1761
        %v1785 = vunpack.c.l.b16 %v1762
        %v1786 = vunpack.c.l.b16 %v1763
        %v1787 = vunpack.c.l.b16 %v1764
        %v1788 = vunpack.c.l.b16 %v1765
        %v1789 = vunpack.c.l.b16 %v1766
        %v1790 = vunpack.c.l.b16 %v1767
        %v1791 = vpack.c.b16 %v1784, %v1783
        %v1792 = vpack.c.b16 %v1786, %v1785
        %v1793 = vpack.c.b16 %v1788, %v1787
        %v1794 = vpack.c.b16 %v1790, %v1789
        %vm1799 = vcmask 523264
        %v1801 = vsel %vm1799, %v1759, 0
        %1803 = vmatprep.subr.bf16.mxu0 0
        %1804 = vmatpush1.bf16.msra.mxu0 %v1791
        %1805 = vmatprep.subr.bf16.mxu0 0
        %1806 = vmatpush1.bf16.msra.mxu0 %v1792
        %1807 = vmatprep.subr.bf16.mxu0 0
        %1808 = vmatpush1.bf16.msra.mxu0 %v1793
        %1809 = vmatprep.subr.bf16.mxu0 0
        %1810 = vmatpush1.bf16.msra.mxu0 %v1794
        %1811 = vmatprep.subr.bf16.mxu0 0
        %1812 = vmatpush1.bf16.msra.mxu0 0
        %1813 = vmatprep.subr.bf16.mxu0 0
        %1814 = vmatpush1.bf16.msra.mxu0 0
        %1815 = vmatprep.subr.bf16.mxu0 0
        %1816 = vmatpush1.bf16.msra.mxu0 0
        %1817 = vmatprep.subr.bf16.mxu0 0
        %1818 = vmatpush1.bf16.msra.mxu0 0
        %1819 = vmatprep.subr.bf16.mxu0 0
        %1820 = vmatpush1.bf16.msra.mxu0 0
        %1821 = vmatprep.subr.bf16.mxu0 0
        %1822 = vmatpush1.bf16.msra.mxu0 0
        %1823 = vmatprep.subr.bf16.mxu0 0
        %1824 = vmatpush1.bf16.msra.mxu0 0
        %1825 = vmatprep.subr.bf16.mxu0 0
        %1826 = vmatpush1.bf16.msra.mxu0 0
        %1827 = vmatprep.subr.bf16.mxu0 0
        %1828 = vmatpush1.bf16.msra.mxu0 0
        %1829 = vmatprep.subr.bf16.mxu0 0
        %1830 = vmatpush1.bf16.msra.mxu0 0
        %1831 = vmatprep.subr.bf16.mxu0 0
        %1832 = vmatpush1.bf16.msra.mxu0 0
        %1833 = vmatprep.subr.bf16.mxu0 0
        %1834 = vmatpush1.bf16.msra.mxu0 0
        %1835 = vmatprep.mubr.bf16.mxu0 0
        %1836 = vmatmul.mubr.bf16.gmra.mrb[0].mxu0 %v1801
        %v1837 = vpop.f32.mrb[0].mxu0
        %v1838 = vadd.f32 %v1773, %v1837
        %v1839 = vpop.f32.mrb[0].mxu0
        %v1840 = vpop.f32.mrb[0].mxu0
        %v1841 = vpop.f32.mrb[0].mxu0
        %1842 = vdwg.mxu0
        %v1843 = vadd.f32 %v1838, %v1661
        %1844 = vst.msk [vmem:[%s536] sm:$0xff] %vm552, %v1843
        %s1845 = sand.u32 %s343, 1
        %s1846 = scalar_lea.sflag [#allocation4], %s1845
        %s1847 = sand.u32 %s343, 1
        %s1848 = smul.addr %s1847, 8
        %s1849 = scalar_lea.vmem [#allocation11], %s1848
        // Predicated region
        $region97: #{tpu_custom_call.1} parent=75 // pred_check
          %p1850 = pneg %p353
        $region98: #{tpu_custom_call.1} parent=75 // pred_check_branch
          %1852 = sbr.rel (%p1850) target = $region100
        $region99: #{tpu_custom_call.1} parent=75 // pred_region
          %s1854 = ssub.s32 128, 128
          %1855 = vsyncadd %s1846, %s1854
          %s1856 = smul.addr %s31, 128
          %s1857 = scalar_lea.hbm %s14, %s1856
          %s1859 = sshll.u32 %s1849, 4
          %s1860 = int_to_ptr.vmem [resolvable:$true] %s1859
          %1862 = dma.vmem_to_hbm [thread:$0]  %s1860, 128, %s1857, %s1846
        $region100: #{tpu_custom_call.1} parent=75 // pred_fallthru
          _
      $region76: #{tpu_custom_call.1} parent=5 // pred_fallthru
        _
      %p1863 = scmp.le.s32.totalorder 2, %s26
      // Predicated region
      $region101: #{tpu_custom_call.1} parent=5 // pred_check
        %p1864 = pneg %p1863
      $region102: #{tpu_custom_call.1} parent=5 // pred_check_branch
        %1866 = sbr.rel (%p1864) target = $region104
      $region103: #{tpu_custom_call.1} parent=5 // pred_region
        %s1867 = ssub.s32 %s26, 2
        // Predicated region
        $region105: #{tpu_custom_call.1} parent=103 // pred_check
          %p1868 = pneg %p359
        $region106: #{tpu_custom_call.1} parent=103 // pred_check_branch
          %1870 = sbr.rel (%p1868) target = $region108
        $region107: #{tpu_custom_call.1} parent=103 // pred_region
          %s1871 = sand.u32 %s344, 1
          %s1872 = scalar_lea.sflag [#allocation4], %s1871
          %s1873 = sand.u32 %s344, 1
          %s1874 = smul.addr %s1873, 8
          %s1875 = scalar_lea.vmem [#allocation11], %s1874
          %1876 = dma.done %s1872, 128
        $region108: #{tpu_custom_call.1} parent=103 // pred_fallthru
          _
      $region104: #{tpu_custom_call.1} parent=5 // pred_fallthru
        _
    $region6: #{tpu_custom_call.1} parent=1 // loop_footer
      %s30 = sadd.s32 1, %s26
    $region7: #{tpu_custom_call.1} parent=1 // loop_footer_branch
      %25 = sbr.rel target = $region3
    $region8: #{tpu_custom_call.1} parent=1 // loop_exit
      _
    %1877 = vsyncpa [#allocation3], 1
    %s1878 = scalar_lea.sflag [#allocation3], 1
    %1879 = vsyncpa %s1878, 1
    %1880 = vsyncpa [#allocation6], 1
    %1881 = vsyncpa [#allocation9], 1
    %1882 = vsyncpa [#allocation4], 1
    %s1883 = scalar_lea.sflag [#allocation4], 1
    %1884 = vsyncpa %s1883, 1

</llo_original>
